<compile_context>
chip_gen: v7x
topology: tpu7x:2x2x1
jax: 0.10.0
libtpu: 0.0.40
codegen_flags: <defaults>
</compile_context>

<pallas_src>
import functools
import math

import jax
import jax.numpy as jnp
from jax import lax
from jax.experimental import pallas as pl
from jax.experimental.pallas import tpu as pltpu

F32 = jnp.float32
BF16 = jnp.bfloat16

# ---- model hyper-params (small synthetic SAM config) ----
IN_CH = 3          # image channels
PATCH = 8          # patch size (conv kernel == stride, so it is a matmul)
EMBED = 32         # transformer width D
HEADS = 4
HEAD_DIM = EMBED // HEADS
MLP_HID = 64
LORA_R = 4         # LoRA rank on q and v projections
NUM_MASK_TOKENS = 4  # SAM: 1 + 3 multimask outputs
HEAD_PAD = 128     # decoder heads zero-padded to a full 128-lane output


def _full_spec(shape):
    nd = len(shape)
    return pl.BlockSpec(shape, lambda *_, _nd=nd: (0,) * _nd)


def _ln(x, g, b):
    mu = jnp.mean(x, axis=-1, keepdims=True)
    var = jnp.mean((x - mu) * (x - mu), axis=-1, keepdims=True)
    return (x - mu) * lax.rsqrt(var + 1e-6) * g + b


# -------------------- kernel 1: fused image-encoder block --------------------
# grid = (B,). Each step runs one batch's T tokens end-to-end in VMEM.

def _encoder_block_kernel(p_ref, wpe_ref, bpe_ref,
                          ln1g_ref, ln1b_ref, wqkv_ref, bqkv_ref,
                          wo_ref, bo_ref, ln2g_ref, ln2b_ref,
                          wm1_ref, bm1_ref, wm2_ref, bm2_ref,
                          o_ref, *, heads, head_dim):
    d = heads * head_dim
    scale = 1.0 / math.sqrt(head_dim)

    # patch embedding (Conv2d kernel==stride==PATCH flattened to one matmul)
    tok = jnp.dot(p_ref[...], wpe_ref[...],
                  preferred_element_type=F32) + bpe_ref[...]            # (T, D)

    # ---- attention sub-block (fused QKV projection, LoRA already folded) ----
    xn = _ln(tok, ln1g_ref[...], ln1b_ref[...])
    qkv = jnp.dot(xn.astype(BF16), wqkv_ref[...],
                  preferred_element_type=F32) + bqkv_ref[...]           # (T, 3D)
    q, k, v = qkv[:, :d], qkv[:, d:2 * d], qkv[:, 2 * d:]

    attn = jnp.zeros_like(tok)
    for h in range(heads):                    # static unrolled loop over heads
        sl = slice(h * head_dim, (h + 1) * head_dim)
        qh = q[:, sl].astype(BF16)
        kh = k[:, sl].astype(BF16)
        vh = v[:, sl].astype(BF16)
        # contract last axes -> no explicit transpose of K
        s = lax.dot_general(qh, kh, (((1,), (1,)), ((), ())),
                            preferred_element_type=F32) * scale         # (T, T)
        s = s - jnp.max(s, axis=-1, keepdims=True)
        p = jnp.exp(s)
        p = p * pl.reciprocal(jnp.sum(p, axis=-1, keepdims=True), approx=True)
        oh = jnp.dot(p.astype(BF16), vh, preferred_element_type=F32)    # (T, hd)
        # concat-free output projection: sum_h oh @ Wo[h*hd:(h+1)*hd, :]
        attn = attn + jnp.dot(oh.astype(BF16), wo_ref[sl, :].astype(BF16),
                              preferred_element_type=F32)
    x = tok + attn + bo_ref[...]

    # ---- MLP sub-block ----
    xn2 = _ln(x, ln2g_ref[...], ln2b_ref[...])
    hid = jnp.dot(xn2.astype(BF16), wm1_ref[...],
                  preferred_element_type=F32) + bm1_ref[...]
    hid = jax.nn.gelu(hid, approximate=True)
    x = x + jnp.dot(hid.astype(BF16), wm2_ref[...],
                    preferred_element_type=F32) + bm2_ref[...]
    o_ref[...] = x


def encoder_block(patches, t, weights):
    bt, ppc = patches.shape
    b = bt // t
    kern = functools.partial(_encoder_block_kernel,
                             heads=HEADS, head_dim=HEAD_DIM)
    in_specs = ([pl.BlockSpec((t, ppc), lambda i: (i, 0))]
                + [_full_spec(w.shape) for w in weights])
    return pl.pallas_call(
        kern,
        grid=(b,),
        out_shape=jax.ShapeDtypeStruct((bt, EMBED), F32),
        in_specs=in_specs,
        out_specs=pl.BlockSpec((t, EMBED), lambda i: (i, 0)),
        compiler_params=pltpu.CompilerParams(dimension_semantics=("parallel",)),
    )(patches, *weights)


# -------------------- kernel 2: fused prompt-add + mask decoder --------------
# grid = (B,). Folds the dense no_mask_embed add, the per-token mask MLP head
# and the pooled IoU head into one launch; head outputs are 128-lane padded.

def _mask_decoder_kernel(x_ref, nme_ref, wd1_ref, bd1_ref, wd2_ref, bd2_ref,
                         wiou_ref, biou_ref, mask_ref, iou_ref):
    fused = x_ref[...] + nme_ref[...]                                    # (T, D)
    h = jnp.dot(fused.astype(BF16), wd1_ref[...],
                preferred_element_type=F32) + bd1_ref[...]               # (T, Hm)
    h = jax.nn.gelu(h, approximate=True)
    mask_ref[...] = jnp.dot(h.astype(BF16), wd2_ref[...],
                            preferred_element_type=F32) + bd2_ref[...]   # (T, 128)
    pooled = jnp.mean(fused, axis=0, keepdims=True)                      # (1, D)
    iou = jnp.dot(pooled.astype(BF16), wiou_ref[...],
                  preferred_element_type=F32) + biou_ref[...]            # (1, 128)
    iou_ref[0] = jnp.broadcast_to(iou, (8, HEAD_PAD))


def mask_decoder(x, t, weights):
    bt, d = x.shape
    b = bt // t
    in_specs = ([pl.BlockSpec((t, d), lambda i: (i, 0))]
                + [_full_spec(w.shape) for w in weights])
    out_shapes = (jax.ShapeDtypeStruct((bt, HEAD_PAD), F32),
                  jax.ShapeDtypeStruct((b, 8, HEAD_PAD), F32))
    out_specs = (pl.BlockSpec((t, HEAD_PAD), lambda i: (i, 0)),
                 pl.BlockSpec((1, 8, HEAD_PAD), lambda i: (i, 0, 0)))
    return pl.pallas_call(
        _mask_decoder_kernel,
        grid=(b,),
        out_shape=out_shapes,
        in_specs=in_specs,
        out_specs=out_specs,
        compiler_params=pltpu.CompilerParams(dimension_semantics=("parallel",)),
    )(x, *weights)


# -------------------- parameters --------------------

def init_params(key):
    ks = iter(jax.random.split(key, 32))

    def unif(k, shape, fan_in):
        bound = 1.0 / math.sqrt(fan_in)
        return jax.random.uniform(k, shape, F32, -bound, bound)

    p = {}
    # patch embedding (Conv2d kernel==stride==PATCH, flattened to a matmul)
    p["w_pe"] = unif(next(ks), (PATCH * PATCH * IN_CH, EMBED), PATCH * PATCH * IN_CH)
    p["b_pe"] = jnp.zeros((EMBED,), F32)
    # transformer block
    p["ln1_g"] = jnp.ones((EMBED,), F32)
    p["ln1_b"] = jnp.zeros((EMBED,), F32)
    p["wq"] = unif(next(ks), (EMBED, EMBED), EMBED)
    p["bq"] = jnp.zeros((EMBED,), F32)
    p["wk"] = unif(next(ks), (EMBED, EMBED), EMBED)
    p["bk"] = jnp.zeros((EMBED,), F32)
    p["wv"] = unif(next(ks), (EMBED, EMBED), EMBED)
    p["bv"] = jnp.zeros((EMBED,), F32)
    p["wo"] = unif(next(ks), (EMBED, EMBED), EMBED)
    p["bo"] = jnp.zeros((EMBED,), F32)
    # LoRA (kaiming_uniform(a=sqrt(5)) for A, zeros for B -- per reset_parameters)
    p["aq"] = unif(next(ks), (EMBED, LORA_R), EMBED)
    p["bq_lora"] = jnp.zeros((LORA_R, EMBED), F32)
    p["av"] = unif(next(ks), (EMBED, LORA_R), EMBED)
    p["bv_lora"] = jnp.zeros((LORA_R, EMBED), F32)
    # MLP
    p["ln2_g"] = jnp.ones((EMBED,), F32)
    p["ln2_b"] = jnp.zeros((EMBED,), F32)
    p["w_m1"] = unif(next(ks), (EMBED, MLP_HID), EMBED)
    p["b_m1"] = jnp.zeros((MLP_HID,), F32)
    p["w_m2"] = unif(next(ks), (MLP_HID, EMBED), MLP_HID)
    p["b_m2"] = jnp.zeros((EMBED,), F32)
    # prompt encoder: nn.Embedding(1, EMBED) no_mask_embed
    p["no_mask_embed"] = jax.random.normal(next(ks), (EMBED,), F32)
    # simplified mask decoder
    p["w_d1"] = unif(next(ks), (EMBED, MLP_HID), EMBED)
    p["b_d1"] = jnp.zeros((MLP_HID,), F32)
    p["w_d2"] = unif(next(ks), (MLP_HID, NUM_MASK_TOKENS), MLP_HID)
    p["b_d2"] = jnp.zeros((NUM_MASK_TOKENS,), F32)
    p["w_iou"] = unif(next(ks), (EMBED, NUM_MASK_TOKENS), EMBED)
    p["b_iou"] = jnp.zeros((NUM_MASK_TOKENS,), F32)
    return p


# -------------------- weight prep (glue, once per call under jit) ------------

def _prep_encoder_weights(p):
    # Fold LoRA into the base q/v weights: W' = W + A @ B.  Equivalent to the
    # live (x@A)@B path (no alpha/r scaling in the reference sam_lora code).
    wq = p["wq"] + p["aq"] @ p["bq_lora"]
    wv = p["wv"] + p["av"] @ p["bv_lora"]
    w_qkv = jnp.concatenate([wq, p["wk"], wv], axis=1).astype(BF16)    # (D, 3D)
    b_qkv = jnp.concatenate([p["bq"], p["bk"], p["bv"]]).reshape(1, 3 * EMBED)
    return [
        p["w_pe"].astype(BF16), p["b_pe"].reshape(1, EMBED),
        p["ln1_g"].reshape(1, EMBED), p["ln1_b"].reshape(1, EMBED),
        w_qkv, b_qkv,
        p["wo"], p["bo"].reshape(1, EMBED),
        p["ln2_g"].reshape(1, EMBED), p["ln2_b"].reshape(1, EMBED),
        p["w_m1"].astype(BF16), p["b_m1"].reshape(1, MLP_HID),
        p["w_m2"].astype(BF16), p["b_m2"].reshape(1, EMBED),
    ]


def _prep_decoder_weights(p):
    padn = HEAD_PAD - NUM_MASK_TOKENS
    w_d2 = jnp.pad(p["w_d2"], ((0, 0), (0, padn)))
    b_d2 = jnp.pad(p["b_d2"], (0, padn))
    w_iou = jnp.pad(p["w_iou"], ((0, 0), (0, padn)))
    b_iou = jnp.pad(p["b_iou"], (0, padn))
    return [
        p["no_mask_embed"].reshape(1, EMBED),
        p["w_d1"].astype(BF16), p["b_d1"].reshape(1, MLP_HID),
        w_d2.astype(BF16), b_d2.reshape(1, HEAD_PAD),
        w_iou.astype(BF16), b_iou.reshape(1, HEAD_PAD),
    ]


# -------------------- LoRA_Sam forward --------------------

@functools.partial(jax.jit, static_argnames=("multimask_output", "image_size"))
def lora_sam_forward(params, batched_input, *, multimask_output, image_size):
    """batched_input: NCHW float32 image tensor (like SAM)."""
    b, c, him, wim = batched_input.shape
    hp, wp = him // PATCH, wim // PATCH
    t = hp * wp
    assert t % 8 == 0, "token count per image must be a multiple of 8"

    # ---- patch extraction (layout plumbing; stays in glue) ----
    x = jnp.transpose(batched_input, (0, 2, 3, 1))
    patches = x.reshape(b, hp, PATCH, wp, PATCH, c)
    patches = (jnp.transpose(patches, (0, 1, 3, 2, 4, 5))
               .reshape(b * t, PATCH * PATCH * c).astype(BF16))

    # ---- image encoder (single fused Pallas kernel) ----
    image_embeddings = encoder_block(patches, t, _prep_encoder_weights(params))

    # ---- prompt encoder + mask decoder (single fused Pallas kernel) ----
    # TODO(synk): full SAM two-way-transformer mask decoder replaced by a
    # per-token MLP mask head + pooled IoU head (same output shapes/semantics).
    mask_pad, iou_pad = mask_decoder(image_embeddings, t,
                                     _prep_decoder_weights(params))
    mask_logits = mask_pad[:, :NUM_MASK_TOKENS]                     # (B*T, M)
    low_res = (mask_logits.reshape(b, hp, wp, NUM_MASK_TOKENS)
                          .transpose(0, 3, 1, 2))                   # (B, M, hp, wp)
    iou_pred = iou_pad[:, 0, :NUM_MASK_TOKENS]                      # (B, M)

    if multimask_output:
        low_res_masks = low_res[:, 1:, :, :]
        iou_predictions = iou_pred[:, 1:]
    else:
        low_res_masks = low_res[:, 0:1, :, :]
        iou_predictions = iou_pred[:, 0:1]

    # postprocess_masks: F.interpolate(..., (image_size, image_size), bilinear)
    masks = jax.image.resize(
        low_res_masks,
        (b, low_res_masks.shape[1], image_size, image_size),
        method="bilinear")

    return {
        "masks": masks,
        "iou_predictions": iou_predictions,
        "low_res_logits": low_res_masks,
    }


# -------------------- main --------------------

if __name__ == "__main__":
    key = jax.random.PRNGKey(0)
    k_param, k_img = jax.random.split(key)

    params = init_params(k_param)
    # batched_input: NCHW like PyTorch; small synthetic shape (2, 3, 32, 32)
    batched_input = jax.random.normal(k_img, (2, IN_CH, 32, 32), F32)
    image_size = 64

    out = lora_sam_forward(params, batched_input,
                           multimask_output=True, image_size=image_size)
    jax.block_until_ready(out)

    assert out["masks"].shape == (2, 3, image_size, image_size)
    assert out["iou_predictions"].shape == (2, 3)
    assert out["low_res_logits"].shape == (2, 3, 4, 4)
    print("KERNEL_OK")
</pallas_src>

<mosaic_0001>
module attributes {stable_mosaic.version = 11 : i64} {
  func.func @_encoder_block_kernel(%arg0: i32, %arg1: memref<16x192xbf16, #tpu.memory_space<vmem>>, %arg2: memref<192x32xbf16, #tpu.memory_space<vmem>>, %arg3: memref<1x32xf32, #tpu.memory_space<vmem>>, %arg4: memref<1x32xf32, #tpu.memory_space<vmem>>, %arg5: memref<1x32xf32, #tpu.memory_space<vmem>>, %arg6: memref<32x96xbf16, #tpu.memory_space<vmem>>, %arg7: memref<1x96xf32, #tpu.memory_space<vmem>>, %arg8: memref<32x32xf32, #tpu.memory_space<vmem>>, %arg9: memref<1x32xf32, #tpu.memory_space<vmem>>, %arg10: memref<1x32xf32, #tpu.memory_space<vmem>>, %arg11: memref<1x32xf32, #tpu.memory_space<vmem>>, %arg12: memref<32x64xbf16, #tpu.memory_space<vmem>>, %arg13: memref<1x64xf32, #tpu.memory_space<vmem>>, %arg14: memref<64x32xbf16, #tpu.memory_space<vmem>>, %arg15: memref<1x32xf32, #tpu.memory_space<vmem>>, %arg16: memref<16x32xf32, #tpu.memory_space<vmem>>) attributes {dimension_semantics = [#tpu.dimension_semantics<parallel>], iteration_bounds = array<i64: 2>, scalar_prefetch = 0 : i64, scratch_operands = 0 : i64, tpu.core_type = #tpu.core_type<tc>, window_params = [{transform_indices = @transform_0, window_bounds = array<i64: 16, 192>}, {pipeline_mode = #tpu.pipeline_mode<synchronous>, transform_indices = @transform_1, window_bounds = array<i64: 192, 32>}, {pipeline_mode = #tpu.pipeline_mode<synchronous>, transform_indices = @transform_2, window_bounds = array<i64: 1, 32>}, {pipeline_mode = #tpu.pipeline_mode<synchronous>, transform_indices = @transform_3, window_bounds = array<i64: 1, 32>}, {pipeline_mode = #tpu.pipeline_mode<synchronous>, transform_indices = @transform_4, window_bounds = array<i64: 1, 32>}, {pipeline_mode = #tpu.pipeline_mode<synchronous>, transform_indices = @transform_5, window_bounds = array<i64: 32, 96>}, {pipeline_mode = #tpu.pipeline_mode<synchronous>, transform_indices = @transform_6, window_bounds = array<i64: 1, 96>}, {pipeline_mode = #tpu.pipeline_mode<synchronous>, transform_indices = @transform_7, window_bounds = array<i64: 32, 32>}, {pipeline_mode = #tpu.pipeline_mode<synchronous>, transform_indices = @transform_8, window_bounds = array<i64: 1, 32>}, {pipeline_mode = #tpu.pipeline_mode<synchronous>, transform_indices = @transform_9, window_bounds = array<i64: 1, 32>}, {pipeline_mode = #tpu.pipeline_mode<synchronous>, transform_indices = @transform_10, window_bounds = array<i64: 1, 32>}, {pipeline_mode = #tpu.pipeline_mode<synchronous>, transform_indices = @transform_11, window_bounds = array<i64: 32, 64>}, {pipeline_mode = #tpu.pipeline_mode<synchronous>, transform_indices = @transform_12, window_bounds = array<i64: 1, 64>}, {pipeline_mode = #tpu.pipeline_mode<synchronous>, transform_indices = @transform_13, window_bounds = array<i64: 64, 32>}, {pipeline_mode = #tpu.pipeline_mode<synchronous>, transform_indices = @transform_14, window_bounds = array<i64: 1, 32>}, {transform_indices = @transform_15, window_bounds = array<i64: 16, 32>}]} {
    %c0 = arith.constant 0 : index
    %c0_0 = arith.constant 0 : index
    %0 = vector.load %arg1[%c0, %c0_0] : memref<16x192xbf16, #tpu.memory_space<vmem>>, vector<16x192xbf16>
    %c0_1 = arith.constant 0 : index
    %c0_2 = arith.constant 0 : index
    %1 = vector.load %arg2[%c0_1, %c0_2] : memref<192x32xbf16, #tpu.memory_space<vmem>>, vector<192x32xbf16>
    %cst = arith.constant dense<0.000000e+00> : vector<16x32xf32>
    %2 = tpu.matmul %0, %1, %cst {dimension_numbers = #tpu.dot_dimension_numbers<[1], [0], [0], [1], [0, 0, 1, 1], [], []>} : vector<16x192xbf16>, vector<192x32xbf16>, vector<16x32xf32> -> vector<16x32xf32>
    %c0_3 = arith.constant 0 : index
    %c0_4 = arith.constant 0 : index
    %3 = vector.load %arg3[%c0_3, %c0_4] : memref<1x32xf32, #tpu.memory_space<vmem>>, vector<1x32xf32>
    %4 = vector.broadcast %3 : vector<1x32xf32> to vector<16x32xf32>
    %5 = arith.addf %2, %4 : vector<16x32xf32>
    %c0_5 = arith.constant 0 : index
    %c0_6 = arith.constant 0 : index
    %6 = vector.load %arg4[%c0_5, %c0_6] : memref<1x32xf32, #tpu.memory_space<vmem>>, vector<1x32xf32>
    %c0_7 = arith.constant 0 : index
    %c0_8 = arith.constant 0 : index
    %7 = vector.load %arg5[%c0_7, %c0_8] : memref<1x32xf32, #tpu.memory_space<vmem>>, vector<1x32xf32>
    %cst_9 = arith.constant dense<0.000000e+00> : vector<16xf32>
    %8 = vector.multi_reduction <add>, %5, %cst_9 [1] : vector<16x32xf32> to vector<16xf32>
    %9 = vector.shape_cast %8 : vector<16xf32> to vector<16x1xf32>
    %cst_10 = arith.constant 3.200000e+01 : f32
    %10 = vector.broadcast %cst_10 : f32 to vector<16x1xf32>
    %11 = arith.divf %9, %10 : vector<16x1xf32>
    %12 = vector.broadcast %11 : vector<16x1xf32> to vector<16x32xf32>
    %13 = arith.subf %5, %12 : vector<16x32xf32>
    %14 = vector.broadcast %11 : vector<16x1xf32> to vector<16x32xf32>
    %15 = arith.subf %5, %14 : vector<16x32xf32>
    %16 = arith.mulf %13, %15 : vector<16x32xf32>
    %cst_11 = arith.constant dense<0.000000e+00> : vector<16xf32>
    %17 = vector.multi_reduction <add>, %16, %cst_11 [1] : vector<16x32xf32> to vector<16xf32>
    %18 = vector.shape_cast %17 : vector<16xf32> to vector<16x1xf32>
    %cst_12 = arith.constant 3.200000e+01 : f32
    %19 = vector.broadcast %cst_12 : f32 to vector<16x1xf32>
    %20 = arith.divf %18, %19 : vector<16x1xf32>
    %21 = vector.broadcast %11 : vector<16x1xf32> to vector<16x32xf32>
    %22 = arith.subf %5, %21 : vector<16x32xf32>
    %cst_13 = arith.constant 9.99999997E-7 : f32
    %23 = vector.broadcast %cst_13 : f32 to vector<16x1xf32>
    %24 = arith.addf %20, %23 : vector<16x1xf32>
    %25 = math.rsqrt %24 : vector<16x1xf32>
    %26 = vector.broadcast %25 : vector<16x1xf32> to vector<16x32xf32>
    %27 = arith.mulf %22, %26 : vector<16x32xf32>
    %28 = vector.broadcast %6 : vector<1x32xf32> to vector<16x32xf32>
    %29 = arith.mulf %27, %28 : vector<16x32xf32>
    %30 = vector.broadcast %7 : vector<1x32xf32> to vector<16x32xf32>
    %31 = arith.addf %29, %30 : vector<16x32xf32>
    %32 = arith.truncf %31 : vector<16x32xf32> to vector<16x32xbf16>
    %c0_14 = arith.constant 0 : index
    %c0_15 = arith.constant 0 : index
    %33 = vector.load %arg6[%c0_14, %c0_15] : memref<32x96xbf16, #tpu.memory_space<vmem>>, vector<32x96xbf16>
    %cst_16 = arith.constant dense<0.000000e+00> : vector<16x96xf32>
    %34 = tpu.matmul %32, %33, %cst_16 {dimension_numbers = #tpu.dot_dimension_numbers<[1], [0], [0], [1], [0, 0, 1, 1], [], []>} : vector<16x32xbf16>, vector<32x96xbf16>, vector<16x96xf32> -> vector<16x96xf32>
    %c0_17 = arith.constant 0 : index
    %c0_18 = arith.constant 0 : index
    %35 = vector.load %arg7[%c0_17, %c0_18] : memref<1x96xf32, #tpu.memory_space<vmem>>, vector<1x96xf32>
    %36 = vector.broadcast %35 : vector<1x96xf32> to vector<16x96xf32>
    %37 = arith.addf %34, %36 : vector<16x96xf32>
    %38 = vector.extract_strided_slice %37 {offsets = [0, 0], sizes = [16, 32], strides = [1, 1]} : vector<16x96xf32> to vector<16x32xf32>
    %39 = vector.extract_strided_slice %37 {offsets = [0, 32], sizes = [16, 32], strides = [1, 1]} : vector<16x96xf32> to vector<16x32xf32>
    %40 = vector.extract_strided_slice %37 {offsets = [0, 64], sizes = [16, 32], strides = [1, 1]} : vector<16x96xf32> to vector<16x32xf32>
    %cst_19 = arith.constant 0.000000e+00 : f32
    %41 = vector.broadcast %cst_19 : f32 to vector<16x32xf32>
    %42 = vector.extract_strided_slice %38 {offsets = [0, 0], sizes = [16, 8], strides = [1, 1]} : vector<16x32xf32> to vector<16x8xf32>
    %43 = arith.truncf %42 : vector<16x8xf32> to vector<16x8xbf16>
    %44 = vector.extract_strided_slice %39 {offsets = [0, 0], sizes = [16, 8], strides = [1, 1]} : vector<16x32xf32> to vector<16x8xf32>
    %45 = arith.truncf %44 : vector<16x8xf32> to vector<16x8xbf16>
    %46 = vector.extract_strided_slice %40 {offsets = [0, 0], sizes = [16, 8], strides = [1, 1]} : vector<16x32xf32> to vector<16x8xf32>
    %47 = arith.truncf %46 : vector<16x8xf32> to vector<16x8xbf16>
    %cst_20 = arith.constant dense<0.000000e+00> : vector<16x16xf32>
    %48 = tpu.matmul %43, %45, %cst_20 {dimension_numbers = #tpu.dot_dimension_numbers<[1], [1], [0], [0], [0, 0, 1, 0], [], []>} : vector<16x8xbf16>, vector<16x8xbf16>, vector<16x16xf32> -> vector<16x16xf32>
    %cst_21 = arith.constant 0.353553385 : f32
    %49 = vector.broadcast %cst_21 : f32 to vector<16x16xf32>
    %50 = arith.mulf %48, %49 : vector<16x16xf32>
    %cst_22 = arith.constant dense<0xFF800000> : vector<16xf32>
    %51 = vector.multi_reduction <maximumf>, %50, %cst_22 [1] : vector<16x16xf32> to vector<16xf32>
    %52 = vector.shape_cast %51 : vector<16xf32> to vector<16x1xf32>
    %53 = vector.broadcast %52 : vector<16x1xf32> to vector<16x16xf32>
    %54 = arith.subf %50, %53 : vector<16x16xf32>
    %55 = math.exp %54 : vector<16x16xf32>
    %cst_23 = arith.constant dense<0.000000e+00> : vector<16xf32>
    %56 = vector.multi_reduction <add>, %55, %cst_23 [1] : vector<16x16xf32> to vector<16xf32>
    %57 = vector.shape_cast %56 : vector<16xf32> to vector<16x1xf32>
    %58 = tpu.reciprocal %57 {approx = true} : vector<16x1xf32> -> vector<16x1xf32>
    %59 = vector.broadcast %58 : vector<16x1xf32> to vector<16x16xf32>
    %60 = arith.mulf %55, %59 : vector<16x16xf32>
    %61 = arith.truncf %60 : vector<16x16xf32> to vector<16x16xbf16>
    %cst_24 = arith.constant dense<0.000000e+00> : vector<16x8xf32>
    %62 = tpu.matmul %61, %47, %cst_24 {dimension_numbers = #tpu.dot_dimension_numbers<[1], [0], [0], [1], [0, 0, 1, 1], [], []>} : vector<16x16xbf16>, vector<16x8xbf16>, vector<16x8xf32> -> vector<16x8xf32>
    %63 = arith.truncf %62 : vector<16x8xf32> to vector<16x8xbf16>
    %c0_25 = arith.constant 0 : index
    %c0_26 = arith.constant 0 : index
    %64 = vector.load %arg8[%c0_25, %c0_26] : memref<32x32xf32, #tpu.memory_space<vmem>>, vector<8x32xf32>
    %65 = arith.truncf %64 : vector<8x32xf32> to vector<8x32xbf16>
    %cst_27 = arith.constant dense<0.000000e+00> : vector<16x32xf32>
    %66 = tpu.matmul %63, %65, %cst_27 {dimension_numbers = #tpu.dot_dimension_numbers<[1], [0], [0], [1], [0, 0, 1, 1], [], []>} : vector<16x8xbf16>, vector<8x32xbf16>, vector<16x32xf32> -> vector<16x32xf32>
    %67 = arith.addf %41, %66 : vector<16x32xf32>
    %68 = vector.extract_strided_slice %38 {offsets = [0, 8], sizes = [16, 8], strides = [1, 1]} : vector<16x32xf32> to vector<16x8xf32>
    %69 = arith.truncf %68 : vector<16x8xf32> to vector<16x8xbf16>
    %70 = vector.extract_strided_slice %39 {offsets = [0, 8], sizes = [16, 8], strides = [1, 1]} : vector<16x32xf32> to vector<16x8xf32>
    %71 = arith.truncf %70 : vector<16x8xf32> to vector<16x8xbf16>
    %72 = vector.extract_strided_slice %40 {offsets = [0, 8], sizes = [16, 8], strides = [1, 1]} : vector<16x32xf32> to vector<16x8xf32>
    %73 = arith.truncf %72 : vector<16x8xf32> to vector<16x8xbf16>
    %cst_28 = arith.constant dense<0.000000e+00> : vector<16x16xf32>
    %74 = tpu.matmul %69, %71, %cst_28 {dimension_numbers = #tpu.dot_dimension_numbers<[1], [1], [0], [0], [0, 0, 1, 0], [], []>} : vector<16x8xbf16>, vector<16x8xbf16>, vector<16x16xf32> -> vector<16x16xf32>
    %cst_29 = arith.constant 0.353553385 : f32
    %75 = vector.broadcast %cst_29 : f32 to vector<16x16xf32>
    %76 = arith.mulf %74, %75 : vector<16x16xf32>
    %cst_30 = arith.constant dense<0xFF800000> : vector<16xf32>
    %77 = vector.multi_reduction <maximumf>, %76, %cst_30 [1] : vector<16x16xf32> to vector<16xf32>
    %78 = vector.shape_cast %77 : vector<16xf32> to vector<16x1xf32>
    %79 = vector.broadcast %78 : vector<16x1xf32> to vector<16x16xf32>
    %80 = arith.subf %76, %79 : vector<16x16xf32>
    %81 = math.exp %80 : vector<16x16xf32>
    %cst_31 = arith.constant dense<0.000000e+00> : vector<16xf32>
    %82 = vector.multi_reduction <add>, %81, %cst_31 [1] : vector<16x16xf32> to vector<16xf32>
    %83 = vector.shape_cast %82 : vector<16xf32> to vector<16x1xf32>
    %84 = tpu.reciprocal %83 {approx = true} : vector<16x1xf32> -> vector<16x1xf32>
    %85 = vector.broadcast %84 : vector<16x1xf32> to vector<16x16xf32>
    %86 = arith.mulf %81, %85 : vector<16x16xf32>
    %87 = arith.truncf %86 : vector<16x16xf32> to vector<16x16xbf16>
    %cst_32 = arith.constant dense<0.000000e+00> : vector<16x8xf32>
    %88 = tpu.matmul %87, %73, %cst_32 {dimension_numbers = #tpu.dot_dimension_numbers<[1], [0], [0], [1], [0, 0, 1, 1], [], []>} : vector<16x16xbf16>, vector<16x8xbf16>, vector<16x8xf32> -> vector<16x8xf32>
    %89 = arith.truncf %88 : vector<16x8xf32> to vector<16x8xbf16>
    %c8 = arith.constant 8 : index
    %c0_33 = arith.constant 0 : index
    %90 = vector.load %arg8[%c8, %c0_33] : memref<32x32xf32, #tpu.memory_space<vmem>>, vector<8x32xf32>
    %91 = arith.truncf %90 : vector<8x32xf32> to vector<8x32xbf16>
    %cst_34 = arith.constant dense<0.000000e+00> : vector<16x32xf32>
    %92 = tpu.matmul %89, %91, %cst_34 {dimension_numbers = #tpu.dot_dimension_numbers<[1], [0], [0], [1], [0, 0, 1, 1], [], []>} : vector<16x8xbf16>, vector<8x32xbf16>, vector<16x32xf32> -> vector<16x32xf32>
    %93 = arith.addf %67, %92 : vector<16x32xf32>
    %94 = vector.extract_strided_slice %38 {offsets = [0, 16], sizes = [16, 8], strides = [1, 1]} : vector<16x32xf32> to vector<16x8xf32>
    %95 = arith.truncf %94 : vector<16x8xf32> to vector<16x8xbf16>
    %96 = vector.extract_strided_slice %39 {offsets = [0, 16], sizes = [16, 8], strides = [1, 1]} : vector<16x32xf32> to vector<16x8xf32>
    %97 = arith.truncf %96 : vector<16x8xf32> to vector<16x8xbf16>
    %98 = vector.extract_strided_slice %40 {offsets = [0, 16], sizes = [16, 8], strides = [1, 1]} : vector<16x32xf32> to vector<16x8xf32>
    %99 = arith.truncf %98 : vector<16x8xf32> to vector<16x8xbf16>
    %cst_35 = arith.constant dense<0.000000e+00> : vector<16x16xf32>
    %100 = tpu.matmul %95, %97, %cst_35 {dimension_numbers = #tpu.dot_dimension_numbers<[1], [1], [0], [0], [0, 0, 1, 0], [], []>} : vector<16x8xbf16>, vector<16x8xbf16>, vector<16x16xf32> -> vector<16x16xf32>
    %cst_36 = arith.constant 0.353553385 : f32
    %101 = vector.broadcast %cst_36 : f32 to vector<16x16xf32>
    %102 = arith.mulf %100, %101 : vector<16x16xf32>
    %cst_37 = arith.constant dense<0xFF800000> : vector<16xf32>
    %103 = vector.multi_reduction <maximumf>, %102, %cst_37 [1] : vector<16x16xf32> to vector<16xf32>
    %104 = vector.shape_cast %103 : vector<16xf32> to vector<16x1xf32>
    %105 = vector.broadcast %104 : vector<16x1xf32> to vector<16x16xf32>
    %106 = arith.subf %102, %105 : vector<16x16xf32>
    %107 = math.exp %106 : vector<16x16xf32>
    %cst_38 = arith.constant dense<0.000000e+00> : vector<16xf32>
    %108 = vector.multi_reduction <add>, %107, %cst_38 [1] : vector<16x16xf32> to vector<16xf32>
    %109 = vector.shape_cast %108 : vector<16xf32> to vector<16x1xf32>
    %110 = tpu.reciprocal %109 {approx = true} : vector<16x1xf32> -> vector<16x1xf32>
    %111 = vector.broadcast %110 : vector<16x1xf32> to vector<16x16xf32>
    %112 = arith.mulf %107, %111 : vector<16x16xf32>
    %113 = arith.truncf %112 : vector<16x16xf32> to vector<16x16xbf16>
    %cst_39 = arith.constant dense<0.000000e+00> : vector<16x8xf32>
    %114 = tpu.matmul %113, %99, %cst_39 {dimension_numbers = #tpu.dot_dimension_numbers<[1], [0], [0], [1], [0, 0, 1, 1], [], []>} : vector<16x16xbf16>, vector<16x8xbf16>, vector<16x8xf32> -> vector<16x8xf32>
    %115 = arith.truncf %114 : vector<16x8xf32> to vector<16x8xbf16>
    %c16 = arith.constant 16 : index
    %c0_40 = arith.constant 0 : index
    %116 = vector.load %arg8[%c16, %c0_40] : memref<32x32xf32, #tpu.memory_space<vmem>>, vector<8x32xf32>
    %117 = arith.truncf %116 : vector<8x32xf32> to vector<8x32xbf16>
    %cst_41 = arith.constant dense<0.000000e+00> : vector<16x32xf32>
    %118 = tpu.matmul %115, %117, %cst_41 {dimension_numbers = #tpu.dot_dimension_numbers<[1], [0], [0], [1], [0, 0, 1, 1], [], []>} : vector<16x8xbf16>, vector<8x32xbf16>, vector<16x32xf32> -> vector<16x32xf32>
    %119 = arith.addf %93, %118 : vector<16x32xf32>
    %120 = vector.extract_strided_slice %38 {offsets = [0, 24], sizes = [16, 8], strides = [1, 1]} : vector<16x32xf32> to vector<16x8xf32>
    %121 = arith.truncf %120 : vector<16x8xf32> to vector<16x8xbf16>
    %122 = vector.extract_strided_slice %39 {offsets = [0, 24], sizes = [16, 8], strides = [1, 1]} : vector<16x32xf32> to vector<16x8xf32>
    %123 = arith.truncf %122 : vector<16x8xf32> to vector<16x8xbf16>
    %124 = vector.extract_strided_slice %40 {offsets = [0, 24], sizes = [16, 8], strides = [1, 1]} : vector<16x32xf32> to vector<16x8xf32>
    %125 = arith.truncf %124 : vector<16x8xf32> to vector<16x8xbf16>
    %cst_42 = arith.constant dense<0.000000e+00> : vector<16x16xf32>
    %126 = tpu.matmul %121, %123, %cst_42 {dimension_numbers = #tpu.dot_dimension_numbers<[1], [1], [0], [0], [0, 0, 1, 0], [], []>} : vector<16x8xbf16>, vector<16x8xbf16>, vector<16x16xf32> -> vector<16x16xf32>
    %cst_43 = arith.constant 0.353553385 : f32
    %127 = vector.broadcast %cst_43 : f32 to vector<16x16xf32>
    %128 = arith.mulf %126, %127 : vector<16x16xf32>
    %cst_44 = arith.constant dense<0xFF800000> : vector<16xf32>
    %129 = vector.multi_reduction <maximumf>, %128, %cst_44 [1] : vector<16x16xf32> to vector<16xf32>
    %130 = vector.shape_cast %129 : vector<16xf32> to vector<16x1xf32>
    %131 = vector.broadcast %130 : vector<16x1xf32> to vector<16x16xf32>
    %132 = arith.subf %128, %131 : vector<16x16xf32>
    %133 = math.exp %132 : vector<16x16xf32>
    %cst_45 = arith.constant dense<0.000000e+00> : vector<16xf32>
    %134 = vector.multi_reduction <add>, %133, %cst_45 [1] : vector<16x16xf32> to vector<16xf32>
    %135 = vector.shape_cast %134 : vector<16xf32> to vector<16x1xf32>
    %136 = tpu.reciprocal %135 {approx = true} : vector<16x1xf32> -> vector<16x1xf32>
    %137 = vector.broadcast %136 : vector<16x1xf32> to vector<16x16xf32>
    %138 = arith.mulf %133, %137 : vector<16x16xf32>
    %139 = arith.truncf %138 : vector<16x16xf32> to vector<16x16xbf16>
    %cst_46 = arith.constant dense<0.000000e+00> : vector<16x8xf32>
    %140 = tpu.matmul %139, %125, %cst_46 {dimension_numbers = #tpu.dot_dimension_numbers<[1], [0], [0], [1], [0, 0, 1, 1], [], []>} : vector<16x16xbf16>, vector<16x8xbf16>, vector<16x8xf32> -> vector<16x8xf32>
    %141 = arith.truncf %140 : vector<16x8xf32> to vector<16x8xbf16>
    %c24 = arith.constant 24 : index
    %c0_47 = arith.constant 0 : index
    %142 = vector.load %arg8[%c24, %c0_47] : memref<32x32xf32, #tpu.memory_space<vmem>>, vector<8x32xf32>
    %143 = arith.truncf %142 : vector<8x32xf32> to vector<8x32xbf16>
    %cst_48 = arith.constant dense<0.000000e+00> : vector<16x32xf32>
    %144 = tpu.matmul %141, %143, %cst_48 {dimension_numbers = #tpu.dot_dimension_numbers<[1], [0], [0], [1], [0, 0, 1, 1], [], []>} : vector<16x8xbf16>, vector<8x32xbf16>, vector<16x32xf32> -> vector<16x32xf32>
    %145 = arith.addf %119, %144 : vector<16x32xf32>
    %146 = arith.addf %5, %145 : vector<16x32xf32>
    %c0_49 = arith.constant 0 : index
    %c0_50 = arith.constant 0 : index
    %147 = vector.load %arg9[%c0_49, %c0_50] : memref<1x32xf32, #tpu.memory_space<vmem>>, vector<1x32xf32>
    %148 = vector.broadcast %147 : vector<1x32xf32> to vector<16x32xf32>
    %149 = arith.addf %146, %148 : vector<16x32xf32>
    %c0_51 = arith.constant 0 : index
    %c0_52 = arith.constant 0 : index
    %150 = vector.load %arg10[%c0_51, %c0_52] : memref<1x32xf32, #tpu.memory_space<vmem>>, vector<1x32xf32>
    %c0_53 = arith.constant 0 : index
    %c0_54 = arith.constant 0 : index
    %151 = vector.load %arg11[%c0_53, %c0_54] : memref<1x32xf32, #tpu.memory_space<vmem>>, vector<1x32xf32>
    %cst_55 = arith.constant dense<0.000000e+00> : vector<16xf32>
    %152 = vector.multi_reduction <add>, %149, %cst_55 [1] : vector<16x32xf32> to vector<16xf32>
    %153 = vector.shape_cast %152 : vector<16xf32> to vector<16x1xf32>
    %cst_56 = arith.constant 3.200000e+01 : f32
    %154 = vector.broadcast %cst_56 : f32 to vector<16x1xf32>
    %155 = arith.divf %153, %154 : vector<16x1xf32>
    %156 = vector.broadcast %155 : vector<16x1xf32> to vector<16x32xf32>
    %157 = arith.subf %149, %156 : vector<16x32xf32>
    %158 = vector.broadcast %155 : vector<16x1xf32> to vector<16x32xf32>
    %159 = arith.subf %149, %158 : vector<16x32xf32>
    %160 = arith.mulf %157, %159 : vector<16x32xf32>
    %cst_57 = arith.constant dense<0.000000e+00> : vector<16xf32>
    %161 = vector.multi_reduction <add>, %160, %cst_57 [1] : vector<16x32xf32> to vector<16xf32>
    %162 = vector.shape_cast %161 : vector<16xf32> to vector<16x1xf32>
    %cst_58 = arith.constant 3.200000e+01 : f32
    %163 = vector.broadcast %cst_58 : f32 to vector<16x1xf32>
    %164 = arith.divf %162, %163 : vector<16x1xf32>
    %165 = vector.broadcast %155 : vector<16x1xf32> to vector<16x32xf32>
    %166 = arith.subf %149, %165 : vector<16x32xf32>
    %cst_59 = arith.constant 9.99999997E-7 : f32
    %167 = vector.broadcast %cst_59 : f32 to vector<16x1xf32>
    %168 = arith.addf %164, %167 : vector<16x1xf32>
    %169 = math.rsqrt %168 : vector<16x1xf32>
    %170 = vector.broadcast %169 : vector<16x1xf32> to vector<16x32xf32>
    %171 = arith.mulf %166, %170 : vector<16x32xf32>
    %172 = vector.broadcast %150 : vector<1x32xf32> to vector<16x32xf32>
    %173 = arith.mulf %171, %172 : vector<16x32xf32>
    %174 = vector.broadcast %151 : vector<1x32xf32> to vector<16x32xf32>
    %175 = arith.addf %173, %174 : vector<16x32xf32>
    %176 = arith.truncf %175 : vector<16x32xf32> to vector<16x32xbf16>
    %c0_60 = arith.constant 0 : index
    %c0_61 = arith.constant 0 : index
    %177 = vector.load %arg12[%c0_60, %c0_61] : memref<32x64xbf16, #tpu.memory_space<vmem>>, vector<32x64xbf16>
    %cst_62 = arith.constant dense<0.000000e+00> : vector<16x64xf32>
    %178 = tpu.matmul %176, %177, %cst_62 {dimension_numbers = #tpu.dot_dimension_numbers<[1], [0], [0], [1], [0, 0, 1, 1], [], []>} : vector<16x32xbf16>, vector<32x64xbf16>, vector<16x64xf32> -> vector<16x64xf32>
    %c0_63 = arith.constant 0 : index
    %c0_64 = arith.constant 0 : index
    %179 = vector.load %arg13[%c0_63, %c0_64] : memref<1x64xf32, #tpu.memory_space<vmem>>, vector<1x64xf32>
    %180 = vector.broadcast %179 : vector<1x64xf32> to vector<16x64xf32>
    %181 = arith.addf %178, %180 : vector<16x64xf32>
    %182 = arith.mulf %181, %181 : vector<16x64xf32>
    %183 = arith.mulf %181, %182 : vector<16x64xf32>
    %cst_65 = arith.constant 4.471500e-02 : f32
    %184 = vector.broadcast %cst_65 : f32 to vector<16x64xf32>
    %185 = arith.mulf %184, %183 : vector<16x64xf32>
    %186 = arith.addf %181, %185 : vector<16x64xf32>
    %cst_66 = arith.constant 0.797884583 : f32
    %187 = vector.broadcast %cst_66 : f32 to vector<16x64xf32>
    %188 = arith.mulf %187, %186 : vector<16x64xf32>
    %189 = math.tanh %188 : vector<16x64xf32>
    %cst_67 = arith.constant 1.000000e+00 : f32
    %190 = vector.broadcast %cst_67 : f32 to vector<16x64xf32>
    %191 = arith.addf %190, %189 : vector<16x64xf32>
    %cst_68 = arith.constant 5.000000e-01 : f32
    %192 = vector.broadcast %cst_68 : f32 to vector<16x64xf32>
    %193 = arith.mulf %192, %191 : vector<16x64xf32>
    %194 = arith.mulf %181, %193 : vector<16x64xf32>
    %195 = arith.truncf %194 : vector<16x64xf32> to vector<16x64xbf16>
    %c0_69 = arith.constant 0 : index
    %c0_70 = arith.constant 0 : index
    %196 = vector.load %arg14[%c0_69, %c0_70] : memref<64x32xbf16, #tpu.memory_space<vmem>>, vector<64x32xbf16>
    %cst_71 = arith.constant dense<0.000000e+00> : vector<16x32xf32>
    %197 = tpu.matmul %195, %196, %cst_71 {dimension_numbers = #tpu.dot_dimension_numbers<[1], [0], [0], [1], [0, 0, 1, 1], [], []>} : vector<16x64xbf16>, vector<64x32xbf16>, vector<16x32xf32> -> vector<16x32xf32>
    %198 = arith.addf %149, %197 : vector<16x32xf32>
    %c0_72 = arith.constant 0 : index
    %c0_73 = arith.constant 0 : index
    %199 = vector.load %arg15[%c0_72, %c0_73] : memref<1x32xf32, #tpu.memory_space<vmem>>, vector<1x32xf32>
    %200 = vector.broadcast %199 : vector<1x32xf32> to vector<16x32xf32>
    %201 = arith.addf %198, %200 : vector<16x32xf32>
    %c0_74 = arith.constant 0 : index
    %c0_75 = arith.constant 0 : index
    %202 = vector.load %arg16[%c0_74, %c0_75] : memref<16x32xf32, #tpu.memory_space<vmem>>, vector<16x32xf32>
    tpu.vector_store %arg16[%c0_74, %c0_75], %201 {strides = array<i32>} : memref<16x32xf32, #tpu.memory_space<vmem>>, vector<16x32xf32>,
    return
  }
  func.func @transform_0(%arg0: i32) -> (i32, i32) {
    %c0_i32 = arith.constant 0 : i32
    %c0_i32_0 = arith.constant 0 : i32
    return %arg0, %c0_i32 : i32, i32
  }
  func.func @transform_1(%arg0: i32) -> (i32, i32) {
    %c0_i32 = arith.constant 0 : i32
    %c0_i32_0 = arith.constant 0 : i32
    %c0_i32_1 = arith.constant 0 : i32
    return %c0_i32, %c0_i32_0 : i32, i32
  }
  func.func @transform_2(%arg0: i32) -> (i32, i32) {
    %c0_i32 = arith.constant 0 : i32
    %c0_i32_0 = arith.constant 0 : i32
    %c0_i32_1 = arith.constant 0 : i32
    return %c0_i32, %c0_i32_0 : i32, i32
  }
  func.func @transform_3(%arg0: i32) -> (i32, i32) {
    %c0_i32 = arith.constant 0 : i32
    %c0_i32_0 = arith.constant 0 : i32
    %c0_i32_1 = arith.constant 0 : i32
    return %c0_i32, %c0_i32_0 : i32, i32
  }
  func.func @transform_4(%arg0: i32) -> (i32, i32) {
    %c0_i32 = arith.constant 0 : i32
    %c0_i32_0 = arith.constant 0 : i32
    %c0_i32_1 = arith.constant 0 : i32
    return %c0_i32, %c0_i32_0 : i32, i32
  }
  func.func @transform_5(%arg0: i32) -> (i32, i32) {
    %c0_i32 = arith.constant 0 : i32
    %c0_i32_0 = arith.constant 0 : i32
    %c0_i32_1 = arith.constant 0 : i32
    return %c0_i32, %c0_i32_0 : i32, i32
  }
  func.func @transform_6(%arg0: i32) -> (i32, i32) {
    %c0_i32 = arith.constant 0 : i32
    %c0_i32_0 = arith.constant 0 : i32
    %c0_i32_1 = arith.constant 0 : i32
    return %c0_i32, %c0_i32_0 : i32, i32
  }
  func.func @transform_7(%arg0: i32) -> (i32, i32) {
    %c0_i32 = arith.constant 0 : i32
    %c0_i32_0 = arith.constant 0 : i32
    %c0_i32_1 = arith.constant 0 : i32
    return %c0_i32, %c0_i32_0 : i32, i32
  }
  func.func @transform_8(%arg0: i32) -> (i32, i32) {
    %c0_i32 = arith.constant 0 : i32
    %c0_i32_0 = arith.constant 0 : i32
    %c0_i32_1 = arith.constant 0 : i32
    return %c0_i32, %c0_i32_0 : i32, i32
  }
  func.func @transform_9(%arg0: i32) -> (i32, i32) {
    %c0_i32 = arith.constant 0 : i32
    %c0_i32_0 = arith.constant 0 : i32
    %c0_i32_1 = arith.constant 0 : i32
    return %c0_i32, %c0_i32_0 : i32, i32
  }
  func.func @transform_10(%arg0: i32) -> (i32, i32) {
    %c0_i32 = arith.constant 0 : i32
    %c0_i32_0 = arith.constant 0 : i32
    %c0_i32_1 = arith.constant 0 : i32
    return %c0_i32, %c0_i32_0 : i32, i32
  }
  func.func @transform_11(%arg0: i32) -> (i32, i32) {
    %c0_i32 = arith.constant 0 : i32
    %c0_i32_0 = arith.constant 0 : i32
    %c0_i32_1 = arith.constant 0 : i32
    return %c0_i32, %c0_i32_0 : i32, i32
  }
  func.func @transform_12(%arg0: i32) -> (i32, i32) {
    %c0_i32 = arith.constant 0 : i32
    %c0_i32_0 = arith.constant 0 : i32
    %c0_i32_1 = arith.constant 0 : i32
    return %c0_i32, %c0_i32_0 : i32, i32
  }
  func.func @transform_13(%arg0: i32) -> (i32, i32) {
    %c0_i32 = arith.constant 0 : i32
    %c0_i32_0 = arith.constant 0 : i32
    %c0_i32_1 = arith.constant 0 : i32
    return %c0_i32, %c0_i32_0 : i32, i32
  }
  func.func @transform_14(%arg0: i32) -> (i32, i32) {
    %c0_i32 = arith.constant 0 : i32
    %c0_i32_0 = arith.constant 0 : i32
    %c0_i32_1 = arith.constant 0 : i32
    return %c0_i32, %c0_i32_0 : i32, i32
  }
  func.func @transform_15(%arg0: i32) -> (i32, i32) {
    %c0_i32 = arith.constant 0 : i32
    %c0_i32_0 = arith.constant 0 : i32
    return %arg0, %c0_i32 : i32, i32
  }
}

module attributes {stable_mosaic.version = 11 : i64} {
  func.func @_mask_decoder_kernel(%arg0: i32, %arg1: memref<16x32xf32, #tpu.memory_space<vmem>>, %arg2: memref<1x32xf32, #tpu.memory_space<vmem>>, %arg3: memref<32x64xbf16, #tpu.memory_space<vmem>>, %arg4: memref<1x64xf32, #tpu.memory_space<vmem>>, %arg5: memref<64x128xbf16, #tpu.memory_space<vmem>>, %arg6: memref<1x128xf32, #tpu.memory_space<vmem>>, %arg7: memref<32x128xbf16, #tpu.memory_space<vmem>>, %arg8: memref<1x128xf32, #tpu.memory_space<vmem>>, %arg9: memref<16x128xf32, #tpu.memory_space<vmem>>, %arg10: memref<1x8x128xf32, #tpu.memory_space<vmem>>) attributes {dimension_semantics = [#tpu.dimension_semantics<parallel>], iteration_bounds = array<i64: 2>, scalar_prefetch = 0 : i64, scratch_operands = 0 : i64, tpu.core_type = #tpu.core_type<tc>, window_params = [{transform_indices = @transform_0, window_bounds = array<i64: 16, 32>}, {pipeline_mode = #tpu.pipeline_mode<synchronous>, transform_indices = @transform_1, window_bounds = array<i64: 1, 32>}, {pipeline_mode = #tpu.pipeline_mode<synchronous>, transform_indices = @transform_2, window_bounds = array<i64: 32, 64>}, {pipeline_mode = #tpu.pipeline_mode<synchronous>, transform_indices = @transform_3, window_bounds = array<i64: 1, 64>}, {pipeline_mode = #tpu.pipeline_mode<synchronous>, transform_indices = @transform_4, window_bounds = array<i64: 64, 128>}, {pipeline_mode = #tpu.pipeline_mode<synchronous>, transform_indices = @transform_5, window_bounds = array<i64: 1, 128>}, {pipeline_mode = #tpu.pipeline_mode<synchronous>, transform_indices = @transform_6, window_bounds = array<i64: 32, 128>}, {pipeline_mode = #tpu.pipeline_mode<synchronous>, transform_indices = @transform_7, window_bounds = array<i64: 1, 128>}, {transform_indices = @transform_8, window_bounds = array<i64: 16, 128>}, {transform_indices = @transform_9, window_bounds = array<i64: 1, 8, 128>}]} {
    %c0 = arith.constant 0 : index
    %c0_0 = arith.constant 0 : index
    %0 = vector.load %arg1[%c0, %c0_0] : memref<16x32xf32, #tpu.memory_space<vmem>>, vector<16x32xf32>
    %c0_1 = arith.constant 0 : index
    %c0_2 = arith.constant 0 : index
    %1 = vector.load %arg2[%c0_1, %c0_2] : memref<1x32xf32, #tpu.memory_space<vmem>>, vector<1x32xf32>
    %2 = vector.broadcast %1 : vector<1x32xf32> to vector<16x32xf32>
    %3 = arith.addf %0, %2 : vector<16x32xf32>
    %4 = arith.truncf %3 : vector<16x32xf32> to vector<16x32xbf16>
    %c0_3 = arith.constant 0 : index
    %c0_4 = arith.constant 0 : index
    %5 = vector.load %arg3[%c0_3, %c0_4] : memref<32x64xbf16, #tpu.memory_space<vmem>>, vector<32x64xbf16>
    %cst = arith.constant dense<0.000000e+00> : vector<16x64xf32>
    %6 = tpu.matmul %4, %5, %cst {dimension_numbers = #tpu.dot_dimension_numbers<[1], [0], [0], [1], [0, 0, 1, 1], [], []>} : vector<16x32xbf16>, vector<32x64xbf16>, vector<16x64xf32> -> vector<16x64xf32>
    %c0_5 = arith.constant 0 : index
    %c0_6 = arith.constant 0 : index
    %7 = vector.load %arg4[%c0_5, %c0_6] : memref<1x64xf32, #tpu.memory_space<vmem>>, vector<1x64xf32>
    %8 = vector.broadcast %7 : vector<1x64xf32> to vector<16x64xf32>
    %9 = arith.addf %6, %8 : vector<16x64xf32>
    %10 = arith.mulf %9, %9 : vector<16x64xf32>
    %11 = arith.mulf %9, %10 : vector<16x64xf32>
    %cst_7 = arith.constant 4.471500e-02 : f32
    %12 = vector.broadcast %cst_7 : f32 to vector<16x64xf32>
    %13 = arith.mulf %12, %11 : vector<16x64xf32>
    %14 = arith.addf %9, %13 : vector<16x64xf32>
    %cst_8 = arith.constant 0.797884583 : f32
    %15 = vector.broadcast %cst_8 : f32 to vector<16x64xf32>
    %16 = arith.mulf %15, %14 : vector<16x64xf32>
    %17 = math.tanh %16 : vector<16x64xf32>
    %cst_9 = arith.constant 1.000000e+00 : f32
    %18 = vector.broadcast %cst_9 : f32 to vector<16x64xf32>
    %19 = arith.addf %18, %17 : vector<16x64xf32>
    %cst_10 = arith.constant 5.000000e-01 : f32
    %20 = vector.broadcast %cst_10 : f32 to vector<16x64xf32>
    %21 = arith.mulf %20, %19 : vector<16x64xf32>
    %22 = arith.mulf %9, %21 : vector<16x64xf32>
    %23 = arith.truncf %22 : vector<16x64xf32> to vector<16x64xbf16>
    %c0_11 = arith.constant 0 : index
    %c0_12 = arith.constant 0 : index
    %24 = vector.load %arg5[%c0_11, %c0_12] : memref<64x128xbf16, #tpu.memory_space<vmem>>, vector<64x128xbf16>
    %cst_13 = arith.constant dense<0.000000e+00> : vector<16x128xf32>
    %25 = tpu.matmul %23, %24, %cst_13 {dimension_numbers = #tpu.dot_dimension_numbers<[1], [0], [0], [1], [0, 0, 1, 1], [], []>} : vector<16x64xbf16>, vector<64x128xbf16>, vector<16x128xf32> -> vector<16x128xf32>
    %c0_14 = arith.constant 0 : index
    %c0_15 = arith.constant 0 : index
    %26 = vector.load %arg6[%c0_14, %c0_15] : memref<1x128xf32, #tpu.memory_space<vmem>>, vector<1x128xf32>
    %27 = vector.broadcast %26 : vector<1x128xf32> to vector<16x128xf32>
    %28 = arith.addf %25, %27 : vector<16x128xf32>
    %c0_16 = arith.constant 0 : index
    %c0_17 = arith.constant 0 : index
    %29 = vector.load %arg9[%c0_16, %c0_17] : memref<16x128xf32, #tpu.memory_space<vmem>>, vector<16x128xf32>
    tpu.vector_store %arg9[%c0_16, %c0_17], %28 {strides = array<i32>} : memref<16x128xf32, #tpu.memory_space<vmem>>, vector<16x128xf32>,
    %cst_18 = arith.constant dense<0.000000e+00> : vector<32xf32>
    %30 = vector.multi_reduction <add>, %3, %cst_18 [0] : vector<16x32xf32> to vector<32xf32>
    %31 = vector.shape_cast %30 : vector<32xf32> to vector<1x32xf32>
    %cst_19 = arith.constant 1.600000e+01 : f32
    %32 = vector.broadcast %cst_19 : f32 to vector<1x32xf32>
    %33 = arith.divf %31, %32 : vector<1x32xf32>
    %34 = arith.truncf %33 : vector<1x32xf32> to vector<1x32xbf16>
    %c0_20 = arith.constant 0 : index
    %c0_21 = arith.constant 0 : index
    %35 = vector.load %arg7[%c0_20, %c0_21] : memref<32x128xbf16, #tpu.memory_space<vmem>>, vector<32x128xbf16>
    %cst_22 = arith.constant dense<0.000000e+00> : vector<1x128xf32>
    %36 = tpu.matmul %34, %35, %cst_22 {dimension_numbers = #tpu.dot_dimension_numbers<[1], [0], [0], [1], [0, 0, 1, 1], [], []>} : vector<1x32xbf16>, vector<32x128xbf16>, vector<1x128xf32> -> vector<1x128xf32>
    %c0_23 = arith.constant 0 : index
    %c0_24 = arith.constant 0 : index
    %37 = vector.load %arg8[%c0_23, %c0_24] : memref<1x128xf32, #tpu.memory_space<vmem>>, vector<1x128xf32>
    %38 = arith.addf %36, %37 : vector<1x128xf32>
    %39 = vector.shape_cast %38 : vector<1x128xf32> to vector<1x128xf32>
    %40 = vector.broadcast %39 : vector<1x128xf32> to vector<8x128xf32>
    %c0_25 = arith.constant 0 : index
    %c0_26 = arith.constant 0 : index
    %c0_27 = arith.constant 0 : index
    %41 = vector.load %arg10[%c0_25, %c0_26, %c0_27] : memref<1x8x128xf32, #tpu.memory_space<vmem>>, vector<1x8x128xf32>
    %42 = vector.shape_cast %41 : vector<1x8x128xf32> to vector<8x128xf32>
    %43 = vector.shape_cast %40 : vector<8x128xf32> to vector<1x8x128xf32>
    tpu.vector_store %arg10[%c0_25, %c0_26, %c0_27], %43 {strides = array<i32>} : memref<1x8x128xf32, #tpu.memory_space<vmem>>, vector<1x8x128xf32>,
    return
  }
  func.func @transform_0(%arg0: i32) -> (i32, i32) {
    %c0_i32 = arith.constant 0 : i32
    %c0_i32_0 = arith.constant 0 : i32
    return %arg0, %c0_i32 : i32, i32
  }
  func.func @transform_1(%arg0: i32) -> (i32, i32) {
    %c0_i32 = arith.constant 0 : i32
    %c0_i32_0 = arith.constant 0 : i32
    %c0_i32_1 = arith.constant 0 : i32
    return %c0_i32, %c0_i32_0 : i32, i32
  }
  func.func @transform_2(%arg0: i32) -> (i32, i32) {
    %c0_i32 = arith.constant 0 : i32
    %c0_i32_0 = arith.constant 0 : i32
    %c0_i32_1 = arith.constant 0 : i32
    return %c0_i32, %c0_i32_0 : i32, i32
  }
  func.func @transform_3(%arg0: i32) -> (i32, i32) {
    %c0_i32 = arith.constant 0 : i32
    %c0_i32_0 = arith.constant 0 : i32
    %c0_i32_1 = arith.constant 0 : i32
    return %c0_i32, %c0_i32_0 : i32, i32
  }
  func.func @transform_4(%arg0: i32) -> (i32, i32) {
    %c0_i32 = arith.constant 0 : i32
    %c0_i32_0 = arith.constant 0 : i32
    %c0_i32_1 = arith.constant 0 : i32
    return %c0_i32, %c0_i32_0 : i32, i32
  }
  func.func @transform_5(%arg0: i32) -> (i32, i32) {
    %c0_i32 = arith.constant 0 : i32
    %c0_i32_0 = arith.constant 0 : i32
    %c0_i32_1 = arith.constant 0 : i32
    return %c0_i32, %c0_i32_0 : i32, i32
  }
  func.func @transform_6(%arg0: i32) -> (i32, i32) {
    %c0_i32 = arith.constant 0 : i32
    %c0_i32_0 = arith.constant 0 : i32
    %c0_i32_1 = arith.constant 0 : i32
    return %c0_i32, %c0_i32_0 : i32, i32
  }
  func.func @transform_7(%arg0: i32) -> (i32, i32) {
    %c0_i32 = arith.constant 0 : i32
    %c0_i32_0 = arith.constant 0 : i32
    %c0_i32_1 = arith.constant 0 : i32
    return %c0_i32, %c0_i32_0 : i32, i32
  }
  func.func @transform_8(%arg0: i32) -> (i32, i32) {
    %c0_i32 = arith.constant 0 : i32
    %c0_i32_0 = arith.constant 0 : i32
    return %arg0, %c0_i32 : i32, i32
  }
  func.func @transform_9(%arg0: i32) -> (i32, i32, i32) {
    %c0_i32 = arith.constant 0 : i32
    %c0_i32_0 = arith.constant 0 : i32
    %c0_i32_1 = arith.constant 0 : i32
    return %arg0, %c0_i32, %c0_i32_0 : i32, i32, i32
  }
}

</mosaic_0001>

<llo_original>
// kernel: lora_sam_forward.3
$region0: #{lora_sam_forward.3}
  #allocation0 [shape = 'u32[]', space=smem, size = 0x4, offset = 0x4, fixed_abs, tag = 'smem constant byte address 0x4 - core index']
  #allocation1 [shape = 'u32[144,128]{1,0:T(1,128)}', space=vmem, size = 0x12000, scoped, tag = 'internal scratch']
  %s0 = inlined_call_operand.vmem [shape: f32[32,32], index: 0, kind: input, shape index: {}]
  %s1 = inlined_call_operand.vmem [shape: f32[1,32], index: 1, kind: input, shape index: {}]
  %s2 = inlined_call_operand.vmem [shape: bf16[32,64], index: 2, kind: input, shape index: {}]
  %s3 = inlined_call_operand.vmem [shape: f32[1,64], index: 3, kind: input, shape index: {}]
  %s4 = inlined_call_operand.vmem [shape: bf16[64,128], index: 4, kind: input, shape index: {}]
  %s5 = inlined_call_operand.vmem [shape: f32[1,128], index: 5, kind: input, shape index: {}]
  %s6 = inlined_call_operand.vmem [shape: bf16[32,128], index: 6, kind: input, shape index: {}]
  %s7 = inlined_call_operand.vmem [shape: f32[1,128], index: 7, kind: input, shape index: {}]
  %s8 = inlined_call_operand.vmem [shape: f32[32,128], index: 8, kind: output, shape index: {0}]
  %s9 = inlined_call_operand.vmem [shape: f32[2,8,128], index: 9, kind: output, shape index: {1}]
  %10 = xla_tuple %s8, %s9
  %s11 = sld [smem:[#allocation0]]
  $region73: #{lora_sam_forward.3} parent=0
    _
  %s13 = ssub.s32 1, %s11
  %s14 = scalar_select 0, %s13, %s11
  loop: start=0, step=1, limit=4
  $region2: #{lora_sam_forward.3} parent=0 // loop_pre_header
    _
  $region3: #{lora_sam_forward.3} parent=0 // loop_header
    %s16 = sphi 0, %s20
    %p17 = scmp.ge.s32.totalorder %s16, 4
    %s26 = sphi 0, %s28
    %s29 = sphi 0, %s26
    %s30 = sphi 0, %s29
    %s46 = sphi 0, %s30
    %s50 = sphi 0, %s50
    %s52 = sphi 0, %s50
    %s53 = sphi 0, %s52
    %s67 = sphi 0, %s53
    %s71 = sphi 0, %s71
    %s73 = sphi 0, %s71
    %s74 = sphi 0, %s73
    %s88 = sphi 0, %s74
    %s92 = sphi 0, %s92
    %s94 = sphi 0, %s92
    %s95 = sphi 0, %s94
    %s109 = sphi 0, %s95
    %s113 = sphi 0, %s113
    %s115 = sphi 0, %s113
    %s116 = sphi 0, %s115
    %s130 = sphi 0, %s116
    %s134 = sphi 0, %s134
    %s136 = sphi 0, %s134
    %s137 = sphi 0, %s136
    %s151 = sphi 0, %s137
    %s155 = sphi 0, %s155
    %s157 = sphi 0, %s155
    %s158 = sphi 0, %s157
    %s172 = sphi 0, %s158
    %s176 = sphi 0, %s176
    %s178 = sphi 0, %s176
    %s179 = sphi 0, %s178
    %s193 = sphi 0, %s179
    %s199 = sphi 0, %s201
    %s202 = sphi 0, %s199
    %s203 = sphi 0, %s202
    %s219 = sphi 0, %s203
    %s225 = sphi 0, %s227
    %s228 = sphi 0, %s225
    %s229 = sphi 0, %s228
    %s245 = sphi 0, %s229
  $region4: #{lora_sam_forward.3} parent=0 // loop_header_branch
    %19 = sbr.rel (%p17) target = $region8
  $region5: #{lora_sam_forward.3} parent=0 // loop_body
    %s21 = ssub.s32 %s16, 1
    %s22 = ssub.s32 %s16, 2
    %s23 = sadd.s32 %s16, 1
    %s24 = ssub.s32 %s16, %s23
    %p25 = scmp.eq.s32.totalorder %s24, 0
    %s27 = sadd.s32 %s26, 1
    %s28 = scalar_select %p25, %s26, %s27
    %p31 = pneg %p25
    %p32 = scmp.eq.s32.totalorder %s16, 1
    %p33 = por %p31, %p32
    %p34 = scmp.ne.s32.totalorder %s26, %s29
    %p35 = scmp.eq.s32.totalorder %s16, 0
    %p36 = por %p34, %p35
    %p37 = scmp.ne.s32.totalorder %s26, %s29
    %p38 = scmp.eq.s32.totalorder %s21, 1
    %p39 = por %p37, %p38
    %p40 = scmp.ne.s32.totalorder %s29, %s30
    %p41 = scmp.eq.s32.totalorder %s21, 0
    %p42 = por %p40, %p41
    %p43 = scmp.ne.s32.totalorder %s29, %s30
    %p44 = scmp.eq.s32.totalorder %s22, 1
    %p45 = por %p43, %p44
    %p47 = scmp.ne.s32.totalorder %s30, %s46
    %p48 = scmp.eq.s32.totalorder %s22, 0
    %p49 = por %p47, %p48
    %s51 = sadd.s32 %s50, 1
    %p54 = scmp.eq.s32.totalorder %s16, 1
    %p55 = scmp.ne.s32.totalorder %s50, %s52
    %p56 = scmp.eq.s32.totalorder %s16, 0
    %p57 = por %p55, %p56
    %p58 = scmp.ne.s32.totalorder %s50, %s52
    %p59 = scmp.eq.s32.totalorder %s21, 1
    %p60 = por %p58, %p59
    %p61 = scmp.ne.s32.totalorder %s52, %s53
    %p62 = scmp.eq.s32.totalorder %s21, 0
    %p63 = por %p61, %p62
    %p64 = scmp.ne.s32.totalorder %s52, %s53
    %p65 = scmp.eq.s32.totalorder %s22, 1
    %p66 = por %p64, %p65
    %p68 = scmp.ne.s32.totalorder %s53, %s67
    %p69 = scmp.eq.s32.totalorder %s22, 0
    %p70 = por %p68, %p69
    %s72 = sadd.s32 %s71, 1
    %p75 = scmp.eq.s32.totalorder %s16, 1
    %p76 = scmp.ne.s32.totalorder %s71, %s73
    %p77 = scmp.eq.s32.totalorder %s16, 0
    %p78 = por %p76, %p77
    %p79 = scmp.ne.s32.totalorder %s71, %s73
    %p80 = scmp.eq.s32.totalorder %s21, 1
    %p81 = por %p79, %p80
    %p82 = scmp.ne.s32.totalorder %s73, %s74
    %p83 = scmp.eq.s32.totalorder %s21, 0
    %p84 = por %p82, %p83
    %p85 = scmp.ne.s32.totalorder %s73, %s74
    %p86 = scmp.eq.s32.totalorder %s22, 1
    %p87 = por %p85, %p86
    %p89 = scmp.ne.s32.totalorder %s74, %s88
    %p90 = scmp.eq.s32.totalorder %s22, 0
    %p91 = por %p89, %p90
    %s93 = sadd.s32 %s92, 1
    %p96 = scmp.eq.s32.totalorder %s16, 1
    %p97 = scmp.ne.s32.totalorder %s92, %s94
    %p98 = scmp.eq.s32.totalorder %s16, 0
    %p99 = por %p97, %p98
    %p100 = scmp.ne.s32.totalorder %s92, %s94
    %p101 = scmp.eq.s32.totalorder %s21, 1
    %p102 = por %p100, %p101
    %p103 = scmp.ne.s32.totalorder %s94, %s95
    %p104 = scmp.eq.s32.totalorder %s21, 0
    %p105 = por %p103, %p104
    %p106 = scmp.ne.s32.totalorder %s94, %s95
    %p107 = scmp.eq.s32.totalorder %s22, 1
    %p108 = por %p106, %p107
    %p110 = scmp.ne.s32.totalorder %s95, %s109
    %p111 = scmp.eq.s32.totalorder %s22, 0
    %p112 = por %p110, %p111
    %s114 = sadd.s32 %s113, 1
    %p117 = scmp.eq.s32.totalorder %s16, 1
    %p118 = scmp.ne.s32.totalorder %s113, %s115
    %p119 = scmp.eq.s32.totalorder %s16, 0
    %p120 = por %p118, %p119
    %p121 = scmp.ne.s32.totalorder %s113, %s115
    %p122 = scmp.eq.s32.totalorder %s21, 1
    %p123 = por %p121, %p122
    %p124 = scmp.ne.s32.totalorder %s115, %s116
    %p125 = scmp.eq.s32.totalorder %s21, 0
    %p126 = por %p124, %p125
    %p127 = scmp.ne.s32.totalorder %s115, %s116
    %p128 = scmp.eq.s32.totalorder %s22, 1
    %p129 = por %p127, %p128
    %p131 = scmp.ne.s32.totalorder %s116, %s130
    %p132 = scmp.eq.s32.totalorder %s22, 0
    %p133 = por %p131, %p132
    %s135 = sadd.s32 %s134, 1
    %p138 = scmp.eq.s32.totalorder %s16, 1
    %p139 = scmp.ne.s32.totalorder %s134, %s136
    %p140 = scmp.eq.s32.totalorder %s16, 0
    %p141 = por %p139, %p140
    %p142 = scmp.ne.s32.totalorder %s134, %s136
    %p143 = scmp.eq.s32.totalorder %s21, 1
    %p144 = por %p142, %p143
    %p145 = scmp.ne.s32.totalorder %s136, %s137
    %p146 = scmp.eq.s32.totalorder %s21, 0
    %p147 = por %p145, %p146
    %p148 = scmp.ne.s32.totalorder %s136, %s137
    %p149 = scmp.eq.s32.totalorder %s22, 1
    %p150 = por %p148, %p149
    %p152 = scmp.ne.s32.totalorder %s137, %s151
    %p153 = scmp.eq.s32.totalorder %s22, 0
    %p154 = por %p152, %p153
    %s156 = sadd.s32 %s155, 1
    %p159 = scmp.eq.s32.totalorder %s16, 1
    %p160 = scmp.ne.s32.totalorder %s155, %s157
    %p161 = scmp.eq.s32.totalorder %s16, 0
    %p162 = por %p160, %p161
    %p163 = scmp.ne.s32.totalorder %s155, %s157
    %p164 = scmp.eq.s32.totalorder %s21, 1
    %p165 = por %p163, %p164
    %p166 = scmp.ne.s32.totalorder %s157, %s158
    %p167 = scmp.eq.s32.totalorder %s21, 0
    %p168 = por %p166, %p167
    %p169 = scmp.ne.s32.totalorder %s157, %s158
    %p170 = scmp.eq.s32.totalorder %s22, 1
    %p171 = por %p169, %p170
    %p173 = scmp.ne.s32.totalorder %s158, %s172
    %p174 = scmp.eq.s32.totalorder %s22, 0
    %p175 = por %p173, %p174
    %s177 = sadd.s32 %s176, 1
    %p180 = scmp.eq.s32.totalorder %s16, 1
    %p181 = scmp.ne.s32.totalorder %s176, %s178
    %p182 = scmp.eq.s32.totalorder %s16, 0
    %p183 = por %p181, %p182
    %p184 = scmp.ne.s32.totalorder %s176, %s178
    %p185 = scmp.eq.s32.totalorder %s21, 1
    %p186 = por %p184, %p185
    %p187 = scmp.ne.s32.totalorder %s178, %s179
    %p188 = scmp.eq.s32.totalorder %s21, 0
    %p189 = por %p187, %p188
    %p190 = scmp.ne.s32.totalorder %s178, %s179
    %p191 = scmp.eq.s32.totalorder %s22, 1
    %p192 = por %p190, %p191
    %p194 = scmp.ne.s32.totalorder %s179, %s193
    %p195 = scmp.eq.s32.totalorder %s22, 0
    %p196 = por %p194, %p195
    %s197 = ssub.s32 %s16, %s23
    %p198 = scmp.eq.s32.totalorder %s197, 0
    %s200 = sadd.s32 %s199, 1
    %s201 = scalar_select %p198, %s199, %s200
    %p204 = pneg %p198
    %p205 = scmp.eq.s32.totalorder %s16, 1
    %p206 = por %p204, %p205
    %p207 = scmp.ne.s32.totalorder %s199, %s202
    %p208 = scmp.eq.s32.totalorder %s16, 0
    %p209 = por %p207, %p208
    %p210 = scmp.ne.s32.totalorder %s199, %s202
    %p211 = scmp.eq.s32.totalorder %s21, 1
    %p212 = por %p210, %p211
    %p213 = scmp.ne.s32.totalorder %s202, %s203
    %p214 = scmp.eq.s32.totalorder %s21, 0
    %p215 = por %p213, %p214
    %p216 = scmp.ne.s32.totalorder %s202, %s203
    %p217 = scmp.eq.s32.totalorder %s22, 1
    %p218 = por %p216, %p217
    %p220 = scmp.ne.s32.totalorder %s203, %s219
    %p221 = scmp.eq.s32.totalorder %s22, 0
    %p222 = por %p220, %p221
    %s223 = ssub.s32 %s16, %s23
    %p224 = scmp.eq.s32.totalorder %s223, 0
    %s226 = sadd.s32 %s225, 1
    %s227 = scalar_select %p224, %s225, %s226
    %p230 = pneg %p224
    %p231 = scmp.eq.s32.totalorder %s16, 1
    %p232 = por %p230, %p231
    %p233 = scmp.ne.s32.totalorder %s225, %s228
    %p234 = scmp.eq.s32.totalorder %s16, 0
    %p235 = por %p233, %p234
    %p236 = scmp.ne.s32.totalorder %s225, %s228
    %p237 = scmp.eq.s32.totalorder %s21, 1
    %p238 = por %p236, %p237
    %p239 = scmp.ne.s32.totalorder %s228, %s229
    %p240 = scmp.eq.s32.totalorder %s21, 0
    %p241 = por %p239, %p240
    %p242 = scmp.ne.s32.totalorder %s228, %s229
    %p243 = scmp.eq.s32.totalorder %s22, 1
    %p244 = por %p242, %p243
    %p246 = scmp.ne.s32.totalorder %s229, %s245
    %p247 = scmp.eq.s32.totalorder %s22, 0
    %p248 = por %p246, %p247
    %p249 = scmp.le.s32.totalorder 1, %s16
    %p250 = scmp.lt.s32.totalorder %s16, 3
    %p251 = pnand %p249, %p250
    %p252 = pneg %p251
    // Predicated region
    $region9: #{lora_sam_forward.3} parent=5 // pred_check
      _
    $region10: #{lora_sam_forward.3} parent=5 // pred_check_branch
      %254 = sbr.rel (%p251) target = $region12
    $region11: #{lora_sam_forward.3} parent=5 // pred_region
      %s255 = ssub.s32 %s16, 1
      // Predicated region
      $region13: #{lora_sam_forward.3} parent=11 // pred_check
        %p256 = pneg %p63
      $region14: #{lora_sam_forward.3} parent=11 // pred_check_branch
        %258 = sbr.rel (%p256) target = $region16
      $region15: #{lora_sam_forward.3} parent=11 // pred_region
        _
      $region16: #{lora_sam_forward.3} parent=11 // pred_fallthru
        _
      // Predicated region
      $region17: #{lora_sam_forward.3} parent=11 // pred_check
        %p259 = pneg %p84
      $region18: #{lora_sam_forward.3} parent=11 // pred_check_branch
        %261 = sbr.rel (%p259) target = $region20
      $region19: #{lora_sam_forward.3} parent=11 // pred_region
        _
      $region20: #{lora_sam_forward.3} parent=11 // pred_fallthru
        _
      // Predicated region
      $region21: #{lora_sam_forward.3} parent=11 // pred_check
        %p262 = pneg %p105
      $region22: #{lora_sam_forward.3} parent=11 // pred_check_branch
        %264 = sbr.rel (%p262) target = $region24
      $region23: #{lora_sam_forward.3} parent=11 // pred_region
        _
      $region24: #{lora_sam_forward.3} parent=11 // pred_fallthru
        _
      // Predicated region
      $region25: #{lora_sam_forward.3} parent=11 // pred_check
        %p265 = pneg %p126
      $region26: #{lora_sam_forward.3} parent=11 // pred_check_branch
        %267 = sbr.rel (%p265) target = $region28
      $region27: #{lora_sam_forward.3} parent=11 // pred_region
        _
      $region28: #{lora_sam_forward.3} parent=11 // pred_fallthru
        _
      // Predicated region
      $region29: #{lora_sam_forward.3} parent=11 // pred_check
        %p268 = pneg %p147
      $region30: #{lora_sam_forward.3} parent=11 // pred_check_branch
        %270 = sbr.rel (%p268) target = $region32
      $region31: #{lora_sam_forward.3} parent=11 // pred_region
        _
      $region32: #{lora_sam_forward.3} parent=11 // pred_fallthru
        _
      // Predicated region
      $region33: #{lora_sam_forward.3} parent=11 // pred_check
        %p271 = pneg %p168
      $region34: #{lora_sam_forward.3} parent=11 // pred_check_branch
        %273 = sbr.rel (%p271) target = $region36
      $region35: #{lora_sam_forward.3} parent=11 // pred_region
        _
      $region36: #{lora_sam_forward.3} parent=11 // pred_fallthru
        _
      // Predicated region
      $region37: #{lora_sam_forward.3} parent=11 // pred_check
        %p274 = pneg %p189
      $region38: #{lora_sam_forward.3} parent=11 // pred_check_branch
        %276 = sbr.rel (%p274) target = $region40
      $region39: #{lora_sam_forward.3} parent=11 // pred_region
        _
      $region40: #{lora_sam_forward.3} parent=11 // pred_fallthru
        _
    $region12: #{lora_sam_forward.3} parent=5 // pred_fallthru
      _
    %p277 = scmp.lt.s32.totalorder %s16, 2
    // Predicated region
    $region41: #{lora_sam_forward.3} parent=5 // pred_check
      %p278 = pneg %p277
    $region42: #{lora_sam_forward.3} parent=5 // pred_check_branch
      %280 = sbr.rel (%p278) target = $region44
    $region43: #{lora_sam_forward.3} parent=5 // pred_region
      // Predicated region
      $region45: #{lora_sam_forward.3} parent=43 // pred_check
        %p281 = pneg %p36
      $region46: #{lora_sam_forward.3} parent=43 // pred_check_branch
        %283 = sbr.rel (%p281) target = $region48
      $region47: #{lora_sam_forward.3} parent=43 // pred_region
        %s284 = smul.u32 2, %s16
        %p285 = scmp.lt.s32.totalorder %s284, 3
        %s286 = scalar_select %p285, %s284, 3
        %s287 = smul.addr %s286, 8
        %s288 = scalar_lea.vmem %s0, %s287
        %s289 = smul.u32 2, %s16
      $region48: #{lora_sam_forward.3} parent=43 // pred_fallthru
        _
    $region44: #{lora_sam_forward.3} parent=5 // pred_fallthru
      _
    %p290 = scmp.le.s32.totalorder 1, %s16
    %p291 = scmp.lt.s32.totalorder %s16, 3
    %p292 = pnand %p290, %p291
    %p293 = pneg %p292
    // Predicated region
    $region49: #{lora_sam_forward.3} parent=5 // pred_check
      _
    $region50: #{lora_sam_forward.3} parent=5 // pred_check_branch
      %295 = sbr.rel (%p292) target = $region52
    $region51: #{lora_sam_forward.3} parent=5 // pred_region
      %s296 = ssub.s32 %s16, 1
      %s297 = smul.u32 2, %s21
      %p298 = scmp.lt.s32.totalorder %s297, 3
      %s299 = scalar_select %p298, %s297, 3
      %s300 = smul.addr %s299, 8
      %s301 = scalar_lea.vmem %s0, %s300
      %p302 = pneg %p42
      %p303 = pneg %p39
      %p304 = pneg %p63
      %p305 = pneg %p60
      %p306 = pneg %p84
      %p307 = pneg %p81
      %p308 = pneg %p105
      %p309 = pneg %p102
      %p310 = pneg %p126
      %p311 = pneg %p123
      %p312 = pneg %p147
      %p313 = pneg %p144
      %p314 = pneg %p168
      %p315 = pneg %p165
      %p316 = pneg %p189
      %p317 = pneg %p186
      %p318 = pneg %p215
      %p319 = pneg %p212
      %s320 = smul.u32 2, %s21
      %p321 = scmp.lt.s32.totalorder %s320, 3
      %s322 = scalar_select %p321, %s320, 3
      %s323 = smul.addr %s322, 8
      %s324 = scalar_lea.vmem %s8, %s323
      %p325 = pneg %p241
      %p326 = pneg %p238
      %p327 = scmp.lt.s32.totalorder %s21, 1
      %s328 = scalar_select %p327, %s21, 1
      %s329 = smul.addr %s328, 8
      %s330 = scalar_lea.vmem %s9, %s329
      %s331 = smul.u32 2, %s21
      %p332 = scmp.lt.s32.totalorder %s331, 3
      %s333 = scalar_select %p332, %s331, 3
      %s334 = smul.addr %s333, 8
      %s335 = scalar_lea.vmem %s0, %s334
      %s336 = smul.u32 2, %s21
      %s337 = smul.u32 2, %s21
      %p338 = scmp.lt.s32.totalorder %s337, 3
      %s339 = scalar_select %p338, %s337, 3
      %s340 = smul.addr %s339, 8
      %s341 = scalar_lea.vmem %s8, %s340
      %s342 = smul.u32 2, %s21
      %p343 = scmp.lt.s32.totalorder %s21, 1
      %s344 = scalar_select %p343, %s21, 1
      %s345 = smul.addr %s344, 8
      %s346 = scalar_lea.vmem %s9, %s345
      %v348 = vld [vmem:[%s335] sm:$0xff]
      %v349 = vld [vmem:[%s335 + $0x8] sm:$0xff]
      %v350 = vld [vmem:[%s1] sm:$0x1]
      %v352 = vlaneseq
      %v353 = vshrl.u32 %v352, 7
      %v354 = vsub.s32 0, %v353
      %v355 = vrot.slane %v350, %v354
      %v357 = vadd.f32 %v348, %v355
      %v358 = vadd.f32 %v349, %v355
      %v359 = vpack.c.bf16 %v358, %v357
      %v360 = vld [vmem:[%s2] sm:$0xf]
      %v361 = vld [vmem:[%s2 + $0x4] sm:$0xf]
      %v362 = vld [vmem:[%s2 + $0x8] sm:$0xf]
      %v363 = vld [vmem:[%s2 + $0xc] sm:$0xf]
      %v364 = vld [vmem:[%s3] sm:$0x1]
      %v366 = vlaneseq
      %v367 = vshrl.u32 %v366, 7
      %v368 = vsub.s32 0, %v367
      %v369 = vrot.slane %v364, %v368
      %v375 = vunpack.c.l.b16 %v360
      %v376 = vunpack.c.l.b16 %v361
      %v377 = vunpack.c.l.b16 %v362
      %v378 = vunpack.c.l.b16 %v363
      %v379 = vpack.c.b16 %v376, %v375
      %v380 = vpack.c.b16 %v378, %v377
      %vm383 = vcmask 261120
      %v385 = vsel %vm383, %v359, 0
      %387 = vmatprep.subr.bf16.mxu0 0
      %388 = vmatpush1.bf16.msra.mxu0 %v379
      %389 = vmatprep.subr.bf16.mxu0 0
      %390 = vmatpush1.bf16.msra.mxu0 %v380
      %391 = vmatprep.subr.bf16.mxu0 0
      %392 = vmatpush1.bf16.msra.mxu0 0
      %393 = vmatprep.subr.bf16.mxu0 0
      %394 = vmatpush1.bf16.msra.mxu0 0
      %395 = vmatprep.subr.bf16.mxu0 0
      %396 = vmatpush1.bf16.msra.mxu0 0
      %397 = vmatprep.subr.bf16.mxu0 0
      %398 = vmatpush1.bf16.msra.mxu0 0
      %399 = vmatprep.subr.bf16.mxu0 0
      %400 = vmatpush1.bf16.msra.mxu0 0
      %401 = vmatprep.subr.bf16.mxu0 0
      %402 = vmatpush1.bf16.msra.mxu0 0
      %403 = vmatprep.subr.bf16.mxu0 0
      %404 = vmatpush1.bf16.msra.mxu0 0
      %405 = vmatprep.subr.bf16.mxu0 0
      %406 = vmatpush1.bf16.msra.mxu0 0
      %407 = vmatprep.subr.bf16.mxu0 0
      %408 = vmatpush1.bf16.msra.mxu0 0
      %409 = vmatprep.subr.bf16.mxu0 0
      %410 = vmatpush1.bf16.msra.mxu0 0
      %411 = vmatprep.subr.bf16.mxu0 0
      %412 = vmatpush1.bf16.msra.mxu0 0
      %413 = vmatprep.subr.bf16.mxu0 0
      %414 = vmatpush1.bf16.msra.mxu0 0
      %415 = vmatprep.subr.bf16.mxu0 0
      %416 = vmatpush1.bf16.msra.mxu0 0
      %417 = vmatprep.subr.bf16.mxu0 0
      %418 = vmatpush1.bf16.msra.mxu0 0
      %419 = vmatprep.mubr.bf16.mxu0 0
      %420 = vmatmul.mubr.bf16.gmra.mrb[0].mxu0 %v385
      %v421 = vpop.f32.mrb[0].mxu0
      %v422 = vadd.f32 %v369, %v421
      %v423 = vpop.f32.mrb[0].mxu0
      %v424 = vpop.f32.mrb[0].mxu0
      %v425 = vadd.f32 %v369, %v424
      %v426 = vpop.f32.mrb[0].mxu0
      %427 = vdwg.mxu0
      %v428 = vmul.f32 %v422, %v422
      %v429 = vmul.f32 %v425, %v425
      %v430 = vmul.f32 %v422, %v428
      %v431 = vmul.f32 %v425, %v429
      %v432 = vmul.f32 %v430, 0.044715
      %v433 = vmul.f32 %v431, 0.044715
      %v434 = vadd.f32 %v422, %v432
      %v435 = vadd.f32 %v425, %v433
      %v436 = vmul.f32 %v434, 0.7978846
      %v437 = vmul.f32 %v435, 0.7978846
      %v438 = vtanh.pop %v436
      %v439 = vtanh.pop %v437
      %v440 = vadd.f32 %v438, 1.0
      %v441 = vadd.f32 %v439, 1.0
      %v442 = vmul.f32 %v440, 0.5
      %v443 = vmul.f32 %v441, 0.5
      %v444 = vmul.f32 %v422, %v442
      %v445 = vmul.f32 %v425, %v443
      %v446 = vpack.c.bf16 %v445, %v444
      %v447 = vld [vmem:[%s4] sm:$0xf]
      %v448 = vld [vmem:[%s4 + $0x4] sm:$0xf]
      %v449 = vld [vmem:[%s4 + $0x8] sm:$0xf]
      %v450 = vld [vmem:[%s4 + $0xc] sm:$0xf]
      %v451 = vld [vmem:[%s4 + $0x10] sm:$0xf]
      %v452 = vld [vmem:[%s4 + $0x14] sm:$0xf]
      %v453 = vld [vmem:[%s4 + $0x18] sm:$0xf]
      %v454 = vld [vmem:[%s4 + $0x1c] sm:$0xf]
      %v455 = vld [vmem:[%s5] sm:$0x1]
      %v457 = vlaneseq
      %v458 = vshrl.u32 %v457, 7
      %v459 = vsub.s32 0, %v458
      %v460 = vrot.slane %v455, %v459
      %v470 = vunpack.c.l.b16 %v447
      %v471 = vunpack.c.l.b16 %v448
      %v472 = vunpack.c.l.b16 %v449
      %v473 = vunpack.c.l.b16 %v450
      %v474 = vunpack.c.l.b16 %v451
      %v475 = vunpack.c.l.b16 %v452
      %v476 = vunpack.c.l.b16 %v453
      %v477 = vunpack.c.l.b16 %v454
      %v478 = vpack.c.b16 %v471, %v470
      %v479 = vpack.c.b16 %v473, %v472
      %v480 = vpack.c.b16 %v475, %v474
      %v481 = vpack.c.b16 %v477, %v476
      %vm486 = vcmask 523264
      %v488 = vsel %vm486, %v446, 0
      %490 = vmatprep.subr.bf16.mxu0 0
      %491 = vmatpush1.bf16.msra.mxu0 %v478
      %492 = vmatprep.subr.bf16.mxu0 0
      %493 = vmatpush1.bf16.msra.mxu0 %v479
      %494 = vmatprep.subr.bf16.mxu0 0
      %495 = vmatpush1.bf16.msra.mxu0 %v480
      %496 = vmatprep.subr.bf16.mxu0 0
      %497 = vmatpush1.bf16.msra.mxu0 %v481
      %498 = vmatprep.subr.bf16.mxu0 0
      %499 = vmatpush1.bf16.msra.mxu0 0
      %500 = vmatprep.subr.bf16.mxu0 0
      %501 = vmatpush1.bf16.msra.mxu0 0
      %502 = vmatprep.subr.bf16.mxu0 0
      %503 = vmatpush1.bf16.msra.mxu0 0
      %504 = vmatprep.subr.bf16.mxu0 0
      %505 = vmatpush1.bf16.msra.mxu0 0
      %506 = vmatprep.subr.bf16.mxu0 0
      %507 = vmatpush1.bf16.msra.mxu0 0
      %508 = vmatprep.subr.bf16.mxu0 0
      %509 = vmatpush1.bf16.msra.mxu0 0
      %510 = vmatprep.subr.bf16.mxu0 0
      %511 = vmatpush1.bf16.msra.mxu0 0
      %512 = vmatprep.subr.bf16.mxu0 0
      %513 = vmatpush1.bf16.msra.mxu0 0
      %514 = vmatprep.subr.bf16.mxu0 0
      %515 = vmatpush1.bf16.msra.mxu0 0
      %516 = vmatprep.subr.bf16.mxu0 0
      %517 = vmatpush1.bf16.msra.mxu0 0
      %518 = vmatprep.subr.bf16.mxu0 0
      %519 = vmatpush1.bf16.msra.mxu0 0
      %520 = vmatprep.subr.bf16.mxu0 0
      %521 = vmatpush1.bf16.msra.mxu0 0
      %522 = vmatprep.mubr.bf16.mxu0 0
      %523 = vmatmul.mubr.bf16.gmra.mrb[0].mxu0 %v488
      %v524 = vpop.f32.mrb[0].mxu0
      %v525 = vadd.f32 %v460, %v524
      %v526 = vpop.f32.mrb[0].mxu0
      %v527 = vpop.f32.mrb[0].mxu0
      %v528 = vadd.f32 %v460, %v527
      %v529 = vpop.f32.mrb[0].mxu0
      %530 = vdwg.mxu0
      %531 = vst [vmem:[%s341] sm:$0xff] %v525
      %532 = vst [vmem:[%s341 + $0x8] sm:$0xff] %v528
      %v533 = vsel %vm383, %v357, 0.0
      %v534 = vsel %vm383, %v358, 0.0
      %v535 = vadd.f32 %v533, %v534
      %v536 = vrot.slane %v535, 4
      %v537 = vadd.f32 %v535, %v536
      %v538 = vrot.slane %v537, 2
      %v539 = vadd.f32 %v537, %v538
      %v540 = vrot.slane %v539, 1
      %v541 = vadd.f32 %v539, %v540
      %v542 = vrcp.pop 16.0
      %v543 = vmul.f32 %v541, %v542
      %v544 = vpack.c.bf16 %v543, %v543
      %v545 = vld [vmem:[%s6] sm:$0xf]
      %v546 = vld [vmem:[%s6 + $0x4] sm:$0xf]
      %v547 = vld [vmem:[%s6 + $0x8] sm:$0xf]
      %v548 = vld [vmem:[%s6 + $0xc] sm:$0xf]
      %v549 = vld [vmem:[%s7] sm:$0x1]
      %v554 = vunpack.c.l.b16 %v545
      %v555 = vunpack.c.l.b16 %v546
      %v556 = vunpack.c.l.b16 %v547
      %v557 = vunpack.c.l.b16 %v548
      %v558 = vpack.c.b16 %v555, %v554
      %v559 = vpack.c.b16 %v557, %v556
      %v563 = vsel %vm383, %v544, 0
      %565 = vmatprep.subr.bf16.mxu0 0
      %566 = vmatpush1.bf16.msra.mxu0 %v558
      %567 = vmatprep.subr.bf16.mxu0 0
      %568 = vmatpush1.bf16.msra.mxu0 %v559
      %569 = vmatprep.subr.bf16.mxu0 0
      %570 = vmatpush1.bf16.msra.mxu0 0
      %571 = vmatprep.subr.bf16.mxu0 0
      %572 = vmatpush1.bf16.msra.mxu0 0
      %573 = vmatprep.subr.bf16.mxu0 0
      %574 = vmatpush1.bf16.msra.mxu0 0
      %575 = vmatprep.subr.bf16.mxu0 0
      %576 = vmatpush1.bf16.msra.mxu0 0
      %577 = vmatprep.subr.bf16.mxu0 0
      %578 = vmatpush1.bf16.msra.mxu0 0
      %579 = vmatprep.subr.bf16.mxu0 0
      %580 = vmatpush1.bf16.msra.mxu0 0
      %581 = vmatprep.subr.bf16.mxu0 0
      %582 = vmatpush1.bf16.msra.mxu0 0
      %583 = vmatprep.subr.bf16.mxu0 0
      %584 = vmatpush1.bf16.msra.mxu0 0
      %585 = vmatprep.subr.bf16.mxu0 0
      %586 = vmatpush1.bf16.msra.mxu0 0
      %587 = vmatprep.subr.bf16.mxu0 0
      %588 = vmatpush1.bf16.msra.mxu0 0
      %589 = vmatprep.subr.bf16.mxu0 0
      %590 = vmatpush1.bf16.msra.mxu0 0
      %591 = vmatprep.subr.bf16.mxu0 0
      %592 = vmatpush1.bf16.msra.mxu0 0
      %593 = vmatprep.subr.bf16.mxu0 0
      %594 = vmatpush1.bf16.msra.mxu0 0
      %595 = vmatprep.subr.bf16.mxu0 0
      %596 = vmatpush1.bf16.msra.mxu0 0
      %597 = vmatprep.mubr.bf16.mxu0 0
      %598 = vmatmul.mubr.bf16.gmra.mrb[0].mxu0 %v563
      %v599 = vpop.f32.mrb[0].mxu0
      %v600 = vadd.f32 %v549, %v599
      %v601 = vpop.f32.mrb[0].mxu0
      %v602 = vpop.f32.mrb[0].mxu0
      %v603 = vpop.f32.mrb[0].mxu0
      %604 = vdwg.mxu0
      %v605 = vlaneseq
      %v606 = vshrl.u32 %v605, 7
      %v607 = vsub.s32 0, %v606
      %v608 = vrot.slane %v600, %v607
      %609 = vst [vmem:[%s346] sm:$0xff] %v608
      %s610 = smul.u32 2, %s21
      %p611 = scmp.lt.s32.totalorder %s610, 3
      %s612 = scalar_select %p611, %s610, 3
      %s613 = smul.addr %s612, 8
      %s614 = scalar_lea.vmem %s8, %s613
      %p615 = scmp.lt.s32.totalorder %s21, 1
      %s616 = scalar_select %p615, %s21, 1
      %s617 = smul.addr %s616, 8
      %s618 = scalar_lea.vmem %s9, %s617
      // Predicated region
      $region53: #{lora_sam_forward.3} parent=51 // pred_check
        %p619 = pneg %p212
      $region54: #{lora_sam_forward.3} parent=51 // pred_check_branch
        %621 = sbr.rel (%p619) target = $region56
      $region55: #{lora_sam_forward.3} parent=51 // pred_region
        %s622 = smul.u32 2, %s21
      $region56: #{lora_sam_forward.3} parent=51 // pred_fallthru
        _
      // Predicated region
      $region57: #{lora_sam_forward.3} parent=51 // pred_check
        %p623 = pneg %p238
      $region58: #{lora_sam_forward.3} parent=51 // pred_check_branch
        %625 = sbr.rel (%p623) target = $region60
      $region59: #{lora_sam_forward.3} parent=51 // pred_region
        _
      $region60: #{lora_sam_forward.3} parent=51 // pred_fallthru
        _
    $region52: #{lora_sam_forward.3} parent=5 // pred_fallthru
      _
    %p626 = scmp.le.s32.totalorder 2, %s16
    // Predicated region
    $region61: #{lora_sam_forward.3} parent=5 // pred_check
      %p627 = pneg %p626
    $region62: #{lora_sam_forward.3} parent=5 // pred_check_branch
      %629 = sbr.rel (%p627) target = $region64
    $region63: #{lora_sam_forward.3} parent=5 // pred_region
      %s630 = ssub.s32 %s16, 2
      // Predicated region
      $region65: #{lora_sam_forward.3} parent=63 // pred_check
        %p631 = pneg %p218
      $region66: #{lora_sam_forward.3} parent=63 // pred_check_branch
        %633 = sbr.rel (%p631) target = $region68
      $region67: #{lora_sam_forward.3} parent=63 // pred_region
        %s634 = smul.u32 2, %s22
        %p635 = scmp.lt.s32.totalorder %s634, 3
        %s636 = scalar_select %p635, %s634, 3
        %s637 = smul.addr %s636, 8
        %s638 = scalar_lea.vmem %s8, %s637
      $region68: #{lora_sam_forward.3} parent=63 // pred_fallthru
        _
      // Predicated region
      $region69: #{lora_sam_forward.3} parent=63 // pred_check
        %p639 = pneg %p244
      $region70: #{lora_sam_forward.3} parent=63 // pred_check_branch
        %641 = sbr.rel (%p639) target = $region72
      $region71: #{lora_sam_forward.3} parent=63 // pred_region
        %p642 = scmp.lt.s32.totalorder %s22, 1
        %s643 = scalar_select %p642, %s22, 1
        %s644 = smul.addr %s643, 8
        %s645 = scalar_lea.vmem %s9, %s644
      $region72: #{lora_sam_forward.3} parent=63 // pred_fallthru
        _
    $region64: #{lora_sam_forward.3} parent=5 // pred_fallthru
      _
  $region6: #{lora_sam_forward.3} parent=0 // loop_footer
    %s20 = sadd.s32 1, %s16
  $region7: #{lora_sam_forward.3} parent=0 // loop_footer_branch
    %15 = sbr.rel target = $region3
  $region8: #{lora_sam_forward.3} parent=0 // loop_exit
    _

// kernel: lora_sam_forward.2
$region0: #{lora_sam_forward.2}
  #allocation0 [shape = 'u32[]', space=smem, size = 0x4, offset = 0x4, fixed_abs, tag = 'smem constant byte address 0x4 - core index']
  #allocation1 [shape = 'u32[144,128]{1,0:T(1,128)}', space=vmem, size = 0x12000, scoped, tag = 'internal scratch']
  %s0 = inlined_call_operand.vmem [shape: bf16[32,192], index: 0, kind: input, shape index: {}]
  %s1 = inlined_call_operand.vmem [shape: bf16[192,32], index: 1, kind: input, shape index: {}]
  %s2 = inlined_call_operand.vmem [shape: f32[1,32], index: 2, kind: input, shape index: {}]
  %s3 = inlined_call_operand.vmem [shape: f32[1,32], index: 3, kind: input, shape index: {}]
  %s4 = inlined_call_operand.vmem [shape: f32[1,32], index: 4, kind: input, shape index: {}]
  %s5 = inlined_call_operand.vmem [shape: bf16[32,96], index: 5, kind: input, shape index: {}]
  %s6 = inlined_call_operand.vmem [shape: f32[1,96], index: 6, kind: input, shape index: {}]
  %s7 = inlined_call_operand.vmem [shape: f32[32,32], index: 7, kind: input, shape index: {}]
  %s8 = inlined_call_operand.vmem [shape: f32[1,32], index: 8, kind: input, shape index: {}]
  %s9 = inlined_call_operand.vmem [shape: f32[1,32], index: 9, kind: input, shape index: {}]
  %s10 = inlined_call_operand.vmem [shape: f32[1,32], index: 10, kind: input, shape index: {}]
  %s11 = inlined_call_operand.vmem [shape: bf16[32,64], index: 11, kind: input, shape index: {}]
  %s12 = inlined_call_operand.vmem [shape: f32[1,64], index: 12, kind: input, shape index: {}]
  %s13 = inlined_call_operand.vmem [shape: bf16[64,32], index: 13, kind: input, shape index: {}]
  %s14 = inlined_call_operand.vmem [shape: f32[1,32], index: 14, kind: input, shape index: {}]
  %s15 = inlined_call_operand.vmem [shape: f32[32,32], index: 15, kind: output, shape index: {}]
  %s16 = sld [smem:[#allocation0]]
  $region93: #{lora_sam_forward.2} parent=0
    _
  %s18 = ssub.s32 1, %s16
  %s19 = scalar_select 0, %s18, %s16
  loop: start=0, step=1, limit=4
  $region2: #{lora_sam_forward.2} parent=0 // loop_pre_header
    _
  $region3: #{lora_sam_forward.2} parent=0 // loop_header
    %s21 = sphi 0, %s25
    %p22 = scmp.ge.s32.totalorder %s21, 4
    %s31 = sphi 0, %s33
    %s34 = sphi 0, %s31
    %s35 = sphi 0, %s34
    %s51 = sphi 0, %s35
    %s55 = sphi 0, %s55
    %s57 = sphi 0, %s55
    %s58 = sphi 0, %s57
    %s72 = sphi 0, %s58
    %s76 = sphi 0, %s76
    %s78 = sphi 0, %s76
    %s79 = sphi 0, %s78
    %s93 = sphi 0, %s79
    %s97 = sphi 0, %s97
    %s99 = sphi 0, %s97
    %s100 = sphi 0, %s99
    %s114 = sphi 0, %s100
    %s118 = sphi 0, %s118
    %s120 = sphi 0, %s118
    %s121 = sphi 0, %s120
    %s135 = sphi 0, %s121
    %s139 = sphi 0, %s139
    %s141 = sphi 0, %s139
    %s142 = sphi 0, %s141
    %s156 = sphi 0, %s142
    %s160 = sphi 0, %s160
    %s162 = sphi 0, %s160
    %s163 = sphi 0, %s162
    %s177 = sphi 0, %s163
    %s181 = sphi 0, %s181
    %s183 = sphi 0, %s181
    %s184 = sphi 0, %s183
    %s198 = sphi 0, %s184
    %s202 = sphi 0, %s202
    %s204 = sphi 0, %s202
    %s205 = sphi 0, %s204
    %s219 = sphi 0, %s205
    %s223 = sphi 0, %s223
    %s225 = sphi 0, %s223
    %s226 = sphi 0, %s225
    %s240 = sphi 0, %s226
    %s244 = sphi 0, %s244
    %s246 = sphi 0, %s244
    %s247 = sphi 0, %s246
    %s261 = sphi 0, %s247
    %s265 = sphi 0, %s265
    %s267 = sphi 0, %s265
    %s268 = sphi 0, %s267
    %s282 = sphi 0, %s268
    %s286 = sphi 0, %s286
    %s288 = sphi 0, %s286
    %s289 = sphi 0, %s288
    %s303 = sphi 0, %s289
    %s307 = sphi 0, %s307
    %s309 = sphi 0, %s307
    %s310 = sphi 0, %s309
    %s324 = sphi 0, %s310
    %s328 = sphi 0, %s328
    %s330 = sphi 0, %s328
    %s331 = sphi 0, %s330
    %s345 = sphi 0, %s331
    %s351 = sphi 0, %s353
    %s354 = sphi 0, %s351
    %s355 = sphi 0, %s354
    %s371 = sphi 0, %s355
  $region4: #{lora_sam_forward.2} parent=0 // loop_header_branch
    %24 = sbr.rel (%p22) target = $region8
  $region5: #{lora_sam_forward.2} parent=0 // loop_body
    %s26 = ssub.s32 %s21, 1
    %s27 = ssub.s32 %s21, 2
    %s28 = sadd.s32 %s21, 1
    %s29 = ssub.s32 %s21, %s28
    %p30 = scmp.eq.s32.totalorder %s29, 0
    %s32 = sadd.s32 %s31, 1
    %s33 = scalar_select %p30, %s31, %s32
    %p36 = pneg %p30
    %p37 = scmp.eq.s32.totalorder %s21, 1
    %p38 = por %p36, %p37
    %p39 = scmp.ne.s32.totalorder %s31, %s34
    %p40 = scmp.eq.s32.totalorder %s21, 0
    %p41 = por %p39, %p40
    %p42 = scmp.ne.s32.totalorder %s31, %s34
    %p43 = scmp.eq.s32.totalorder %s26, 1
    %p44 = por %p42, %p43
    %p45 = scmp.ne.s32.totalorder %s34, %s35
    %p46 = scmp.eq.s32.totalorder %s26, 0
    %p47 = por %p45, %p46
    %p48 = scmp.ne.s32.totalorder %s34, %s35
    %p49 = scmp.eq.s32.totalorder %s27, 1
    %p50 = por %p48, %p49
    %p52 = scmp.ne.s32.totalorder %s35, %s51
    %p53 = scmp.eq.s32.totalorder %s27, 0
    %p54 = por %p52, %p53
    %s56 = sadd.s32 %s55, 1
    %p59 = scmp.eq.s32.totalorder %s21, 1
    %p60 = scmp.ne.s32.totalorder %s55, %s57
    %p61 = scmp.eq.s32.totalorder %s21, 0
    %p62 = por %p60, %p61
    %p63 = scmp.ne.s32.totalorder %s55, %s57
    %p64 = scmp.eq.s32.totalorder %s26, 1
    %p65 = por %p63, %p64
    %p66 = scmp.ne.s32.totalorder %s57, %s58
    %p67 = scmp.eq.s32.totalorder %s26, 0
    %p68 = por %p66, %p67
    %p69 = scmp.ne.s32.totalorder %s57, %s58
    %p70 = scmp.eq.s32.totalorder %s27, 1
    %p71 = por %p69, %p70
    %p73 = scmp.ne.s32.totalorder %s58, %s72
    %p74 = scmp.eq.s32.totalorder %s27, 0
    %p75 = por %p73, %p74
    %s77 = sadd.s32 %s76, 1
    %p80 = scmp.eq.s32.totalorder %s21, 1
    %p81 = scmp.ne.s32.totalorder %s76, %s78
    %p82 = scmp.eq.s32.totalorder %s21, 0
    %p83 = por %p81, %p82
    %p84 = scmp.ne.s32.totalorder %s76, %s78
    %p85 = scmp.eq.s32.totalorder %s26, 1
    %p86 = por %p84, %p85
    %p87 = scmp.ne.s32.totalorder %s78, %s79
    %p88 = scmp.eq.s32.totalorder %s26, 0
    %p89 = por %p87, %p88
    %p90 = scmp.ne.s32.totalorder %s78, %s79
    %p91 = scmp.eq.s32.totalorder %s27, 1
    %p92 = por %p90, %p91
    %p94 = scmp.ne.s32.totalorder %s79, %s93
    %p95 = scmp.eq.s32.totalorder %s27, 0
    %p96 = por %p94, %p95
    %s98 = sadd.s32 %s97, 1
    %p101 = scmp.eq.s32.totalorder %s21, 1
    %p102 = scmp.ne.s32.totalorder %s97, %s99
    %p103 = scmp.eq.s32.totalorder %s21, 0
    %p104 = por %p102, %p103
    %p105 = scmp.ne.s32.totalorder %s97, %s99
    %p106 = scmp.eq.s32.totalorder %s26, 1
    %p107 = por %p105, %p106
    %p108 = scmp.ne.s32.totalorder %s99, %s100
    %p109 = scmp.eq.s32.totalorder %s26, 0
    %p110 = por %p108, %p109
    %p111 = scmp.ne.s32.totalorder %s99, %s100
    %p112 = scmp.eq.s32.totalorder %s27, 1
    %p113 = por %p111, %p112
    %p115 = scmp.ne.s32.totalorder %s100, %s114
    %p116 = scmp.eq.s32.totalorder %s27, 0
    %p117 = por %p115, %p116
    %s119 = sadd.s32 %s118, 1
    %p122 = scmp.eq.s32.totalorder %s21, 1
    %p123 = scmp.ne.s32.totalorder %s118, %s120
    %p124 = scmp.eq.s32.totalorder %s21, 0
    %p125 = por %p123, %p124
    %p126 = scmp.ne.s32.totalorder %s118, %s120
    %p127 = scmp.eq.s32.totalorder %s26, 1
    %p128 = por %p126, %p127
    %p129 = scmp.ne.s32.totalorder %s120, %s121
    %p130 = scmp.eq.s32.totalorder %s26, 0
    %p131 = por %p129, %p130
    %p132 = scmp.ne.s32.totalorder %s120, %s121
    %p133 = scmp.eq.s32.totalorder %s27, 1
    %p134 = por %p132, %p133
    %p136 = scmp.ne.s32.totalorder %s121, %s135
    %p137 = scmp.eq.s32.totalorder %s27, 0
    %p138 = por %p136, %p137
    %s140 = sadd.s32 %s139, 1
    %p143 = scmp.eq.s32.totalorder %s21, 1
    %p144 = scmp.ne.s32.totalorder %s139, %s141
    %p145 = scmp.eq.s32.totalorder %s21, 0
    %p146 = por %p144, %p145
    %p147 = scmp.ne.s32.totalorder %s139, %s141
    %p148 = scmp.eq.s32.totalorder %s26, 1
    %p149 = por %p147, %p148
    %p150 = scmp.ne.s32.totalorder %s141, %s142
    %p151 = scmp.eq.s32.totalorder %s26, 0
    %p152 = por %p150, %p151
    %p153 = scmp.ne.s32.totalorder %s141, %s142
    %p154 = scmp.eq.s32.totalorder %s27, 1
    %p155 = por %p153, %p154
    %p157 = scmp.ne.s32.totalorder %s142, %s156
    %p158 = scmp.eq.s32.totalorder %s27, 0
    %p159 = por %p157, %p158
    %s161 = sadd.s32 %s160, 1
    %p164 = scmp.eq.s32.totalorder %s21, 1
    %p165 = scmp.ne.s32.totalorder %s160, %s162
    %p166 = scmp.eq.s32.totalorder %s21, 0
    %p167 = por %p165, %p166
    %p168 = scmp.ne.s32.totalorder %s160, %s162
    %p169 = scmp.eq.s32.totalorder %s26, 1
    %p170 = por %p168, %p169
    %p171 = scmp.ne.s32.totalorder %s162, %s163
    %p172 = scmp.eq.s32.totalorder %s26, 0
    %p173 = por %p171, %p172
    %p174 = scmp.ne.s32.totalorder %s162, %s163
    %p175 = scmp.eq.s32.totalorder %s27, 1
    %p176 = por %p174, %p175
    %p178 = scmp.ne.s32.totalorder %s163, %s177
    %p179 = scmp.eq.s32.totalorder %s27, 0
    %p180 = por %p178, %p179
    %s182 = sadd.s32 %s181, 1
    %p185 = scmp.eq.s32.totalorder %s21, 1
    %p186 = scmp.ne.s32.totalorder %s181, %s183
    %p187 = scmp.eq.s32.totalorder %s21, 0
    %p188 = por %p186, %p187
    %p189 = scmp.ne.s32.totalorder %s181, %s183
    %p190 = scmp.eq.s32.totalorder %s26, 1
    %p191 = por %p189, %p190
    %p192 = scmp.ne.s32.totalorder %s183, %s184
    %p193 = scmp.eq.s32.totalorder %s26, 0
    %p194 = por %p192, %p193
    %p195 = scmp.ne.s32.totalorder %s183, %s184
    %p196 = scmp.eq.s32.totalorder %s27, 1
    %p197 = por %p195, %p196
    %p199 = scmp.ne.s32.totalorder %s184, %s198
    %p200 = scmp.eq.s32.totalorder %s27, 0
    %p201 = por %p199, %p200
    %s203 = sadd.s32 %s202, 1
    %p206 = scmp.eq.s32.totalorder %s21, 1
    %p207 = scmp.ne.s32.totalorder %s202, %s204
    %p208 = scmp.eq.s32.totalorder %s21, 0
    %p209 = por %p207, %p208
    %p210 = scmp.ne.s32.totalorder %s202, %s204
    %p211 = scmp.eq.s32.totalorder %s26, 1
    %p212 = por %p210, %p211
    %p213 = scmp.ne.s32.totalorder %s204, %s205
    %p214 = scmp.eq.s32.totalorder %s26, 0
    %p215 = por %p213, %p214
    %p216 = scmp.ne.s32.totalorder %s204, %s205
    %p217 = scmp.eq.s32.totalorder %s27, 1
    %p218 = por %p216, %p217
    %p220 = scmp.ne.s32.totalorder %s205, %s219
    %p221 = scmp.eq.s32.totalorder %s27, 0
    %p222 = por %p220, %p221
    %s224 = sadd.s32 %s223, 1
    %p227 = scmp.eq.s32.totalorder %s21, 1
    %p228 = scmp.ne.s32.totalorder %s223, %s225
    %p229 = scmp.eq.s32.totalorder %s21, 0
    %p230 = por %p228, %p229
    %p231 = scmp.ne.s32.totalorder %s223, %s225
    %p232 = scmp.eq.s32.totalorder %s26, 1
    %p233 = por %p231, %p232
    %p234 = scmp.ne.s32.totalorder %s225, %s226
    %p235 = scmp.eq.s32.totalorder %s26, 0
    %p236 = por %p234, %p235
    %p237 = scmp.ne.s32.totalorder %s225, %s226
    %p238 = scmp.eq.s32.totalorder %s27, 1
    %p239 = por %p237, %p238
    %p241 = scmp.ne.s32.totalorder %s226, %s240
    %p242 = scmp.eq.s32.totalorder %s27, 0
    %p243 = por %p241, %p242
    %s245 = sadd.s32 %s244, 1
    %p248 = scmp.eq.s32.totalorder %s21, 1
    %p249 = scmp.ne.s32.totalorder %s244, %s246
    %p250 = scmp.eq.s32.totalorder %s21, 0
    %p251 = por %p249, %p250
    %p252 = scmp.ne.s32.totalorder %s244, %s246
    %p253 = scmp.eq.s32.totalorder %s26, 1
    %p254 = por %p252, %p253
    %p255 = scmp.ne.s32.totalorder %s246, %s247
    %p256 = scmp.eq.s32.totalorder %s26, 0
    %p257 = por %p255, %p256
    %p258 = scmp.ne.s32.totalorder %s246, %s247
    %p259 = scmp.eq.s32.totalorder %s27, 1
    %p260 = por %p258, %p259
    %p262 = scmp.ne.s32.totalorder %s247, %s261
    %p263 = scmp.eq.s32.totalorder %s27, 0
    %p264 = por %p262, %p263
    %s266 = sadd.s32 %s265, 1
    %p269 = scmp.eq.s32.totalorder %s21, 1
    %p270 = scmp.ne.s32.totalorder %s265, %s267
    %p271 = scmp.eq.s32.totalorder %s21, 0
    %p272 = por %p270, %p271
    %p273 = scmp.ne.s32.totalorder %s265, %s267
    %p274 = scmp.eq.s32.totalorder %s26, 1
    %p275 = por %p273, %p274
    %p276 = scmp.ne.s32.totalorder %s267, %s268
    %p277 = scmp.eq.s32.totalorder %s26, 0
    %p278 = por %p276, %p277
    %p279 = scmp.ne.s32.totalorder %s267, %s268
    %p280 = scmp.eq.s32.totalorder %s27, 1
    %p281 = por %p279, %p280
    %p283 = scmp.ne.s32.totalorder %s268, %s282
    %p284 = scmp.eq.s32.totalorder %s27, 0
    %p285 = por %p283, %p284
    %s287 = sadd.s32 %s286, 1
    %p290 = scmp.eq.s32.totalorder %s21, 1
    %p291 = scmp.ne.s32.totalorder %s286, %s288
    %p292 = scmp.eq.s32.totalorder %s21, 0
    %p293 = por %p291, %p292
    %p294 = scmp.ne.s32.totalorder %s286, %s288
    %p295 = scmp.eq.s32.totalorder %s26, 1
    %p296 = por %p294, %p295
    %p297 = scmp.ne.s32.totalorder %s288, %s289
    %p298 = scmp.eq.s32.totalorder %s26, 0
    %p299 = por %p297, %p298
    %p300 = scmp.ne.s32.totalorder %s288, %s289
    %p301 = scmp.eq.s32.totalorder %s27, 1
    %p302 = por %p300, %p301
    %p304 = scmp.ne.s32.totalorder %s289, %s303
    %p305 = scmp.eq.s32.totalorder %s27, 0
    %p306 = por %p304, %p305
    %s308 = sadd.s32 %s307, 1
    %p311 = scmp.eq.s32.totalorder %s21, 1
    %p312 = scmp.ne.s32.totalorder %s307, %s309
    %p313 = scmp.eq.s32.totalorder %s21, 0
    %p314 = por %p312, %p313
    %p315 = scmp.ne.s32.totalorder %s307, %s309
    %p316 = scmp.eq.s32.totalorder %s26, 1
    %p317 = por %p315, %p316
    %p318 = scmp.ne.s32.totalorder %s309, %s310
    %p319 = scmp.eq.s32.totalorder %s26, 0
    %p320 = por %p318, %p319
    %p321 = scmp.ne.s32.totalorder %s309, %s310
    %p322 = scmp.eq.s32.totalorder %s27, 1
    %p323 = por %p321, %p322
    %p325 = scmp.ne.s32.totalorder %s310, %s324
    %p326 = scmp.eq.s32.totalorder %s27, 0
    %p327 = por %p325, %p326
    %s329 = sadd.s32 %s328, 1
    %p332 = scmp.eq.s32.totalorder %s21, 1
    %p333 = scmp.ne.s32.totalorder %s328, %s330
    %p334 = scmp.eq.s32.totalorder %s21, 0
    %p335 = por %p333, %p334
    %p336 = scmp.ne.s32.totalorder %s328, %s330
    %p337 = scmp.eq.s32.totalorder %s26, 1
    %p338 = por %p336, %p337
    %p339 = scmp.ne.s32.totalorder %s330, %s331
    %p340 = scmp.eq.s32.totalorder %s26, 0
    %p341 = por %p339, %p340
    %p342 = scmp.ne.s32.totalorder %s330, %s331
    %p343 = scmp.eq.s32.totalorder %s27, 1
    %p344 = por %p342, %p343
    %p346 = scmp.ne.s32.totalorder %s331, %s345
    %p347 = scmp.eq.s32.totalorder %s27, 0
    %p348 = por %p346, %p347
    %s349 = ssub.s32 %s21, %s28
    %p350 = scmp.eq.s32.totalorder %s349, 0
    %s352 = sadd.s32 %s351, 1
    %s353 = scalar_select %p350, %s351, %s352
    %p356 = pneg %p350
    %p357 = scmp.eq.s32.totalorder %s21, 1
    %p358 = por %p356, %p357
    %p359 = scmp.ne.s32.totalorder %s351, %s354
    %p360 = scmp.eq.s32.totalorder %s21, 0
    %p361 = por %p359, %p360
    %p362 = scmp.ne.s32.totalorder %s351, %s354
    %p363 = scmp.eq.s32.totalorder %s26, 1
    %p364 = por %p362, %p363
    %p365 = scmp.ne.s32.totalorder %s354, %s355
    %p366 = scmp.eq.s32.totalorder %s26, 0
    %p367 = por %p365, %p366
    %p368 = scmp.ne.s32.totalorder %s354, %s355
    %p369 = scmp.eq.s32.totalorder %s27, 1
    %p370 = por %p368, %p369
    %p372 = scmp.ne.s32.totalorder %s355, %s371
    %p373 = scmp.eq.s32.totalorder %s27, 0
    %p374 = por %p372, %p373
    %p375 = scmp.le.s32.totalorder 1, %s21
    %p376 = scmp.lt.s32.totalorder %s21, 3
    %p377 = pnand %p375, %p376
    %p378 = pneg %p377
    // Predicated region
    $region9: #{lora_sam_forward.2} parent=5 // pred_check
      _
    $region10: #{lora_sam_forward.2} parent=5 // pred_check_branch
      %380 = sbr.rel (%p377) target = $region12
    $region11: #{lora_sam_forward.2} parent=5 // pred_region
      %s381 = ssub.s32 %s21, 1
      // Predicated region
      $region13: #{lora_sam_forward.2} parent=11 // pred_check
        %p382 = pneg %p68
      $region14: #{lora_sam_forward.2} parent=11 // pred_check_branch
        %384 = sbr.rel (%p382) target = $region16
      $region15: #{lora_sam_forward.2} parent=11 // pred_region
        _
      $region16: #{lora_sam_forward.2} parent=11 // pred_fallthru
        _
      // Predicated region
      $region17: #{lora_sam_forward.2} parent=11 // pred_check
        %p385 = pneg %p89
      $region18: #{lora_sam_forward.2} parent=11 // pred_check_branch
        %387 = sbr.rel (%p385) target = $region20
      $region19: #{lora_sam_forward.2} parent=11 // pred_region
        _
      $region20: #{lora_sam_forward.2} parent=11 // pred_fallthru
        _
      // Predicated region
      $region21: #{lora_sam_forward.2} parent=11 // pred_check
        %p388 = pneg %p110
      $region22: #{lora_sam_forward.2} parent=11 // pred_check_branch
        %390 = sbr.rel (%p388) target = $region24
      $region23: #{lora_sam_forward.2} parent=11 // pred_region
        _
      $region24: #{lora_sam_forward.2} parent=11 // pred_fallthru
        _
      // Predicated region
      $region25: #{lora_sam_forward.2} parent=11 // pred_check
        %p391 = pneg %p131
      $region26: #{lora_sam_forward.2} parent=11 // pred_check_branch
        %393 = sbr.rel (%p391) target = $region28
      $region27: #{lora_sam_forward.2} parent=11 // pred_region
        _
      $region28: #{lora_sam_forward.2} parent=11 // pred_fallthru
        _
      // Predicated region
      $region29: #{lora_sam_forward.2} parent=11 // pred_check
        %p394 = pneg %p152
      $region30: #{lora_sam_forward.2} parent=11 // pred_check_branch
        %396 = sbr.rel (%p394) target = $region32
      $region31: #{lora_sam_forward.2} parent=11 // pred_region
        _
      $region32: #{lora_sam_forward.2} parent=11 // pred_fallthru
        _
      // Predicated region
      $region33: #{lora_sam_forward.2} parent=11 // pred_check
        %p397 = pneg %p173
      $region34: #{lora_sam_forward.2} parent=11 // pred_check_branch
        %399 = sbr.rel (%p397) target = $region36
      $region35: #{lora_sam_forward.2} parent=11 // pred_region
        _
      $region36: #{lora_sam_forward.2} parent=11 // pred_fallthru
        _
      // Predicated region
      $region37: #{lora_sam_forward.2} parent=11 // pred_check
        %p400 = pneg %p194
      $region38: #{lora_sam_forward.2} parent=11 // pred_check_branch
        %402 = sbr.rel (%p400) target = $region40
      $region39: #{lora_sam_forward.2} parent=11 // pred_region
        _
      $region40: #{lora_sam_forward.2} parent=11 // pred_fallthru
        _
      // Predicated region
      $region41: #{lora_sam_forward.2} parent=11 // pred_check
        %p403 = pneg %p215
      $region42: #{lora_sam_forward.2} parent=11 // pred_check_branch
        %405 = sbr.rel (%p403) target = $region44
      $region43: #{lora_sam_forward.2} parent=11 // pred_region
        _
      $region44: #{lora_sam_forward.2} parent=11 // pred_fallthru
        _
      // Predicated region
      $region45: #{lora_sam_forward.2} parent=11 // pred_check
        %p406 = pneg %p236
      $region46: #{lora_sam_forward.2} parent=11 // pred_check_branch
        %408 = sbr.rel (%p406) target = $region48
      $region47: #{lora_sam_forward.2} parent=11 // pred_region
        _
      $region48: #{lora_sam_forward.2} parent=11 // pred_fallthru
        _
      // Predicated region
      $region49: #{lora_sam_forward.2} parent=11 // pred_check
        %p409 = pneg %p257
      $region50: #{lora_sam_forward.2} parent=11 // pred_check_branch
        %411 = sbr.rel (%p409) target = $region52
      $region51: #{lora_sam_forward.2} parent=11 // pred_region
        _
      $region52: #{lora_sam_forward.2} parent=11 // pred_fallthru
        _
      // Predicated region
      $region53: #{lora_sam_forward.2} parent=11 // pred_check
        %p412 = pneg %p278
      $region54: #{lora_sam_forward.2} parent=11 // pred_check_branch
        %414 = sbr.rel (%p412) target = $region56
      $region55: #{lora_sam_forward.2} parent=11 // pred_region
        _
      $region56: #{lora_sam_forward.2} parent=11 // pred_fallthru
        _
      // Predicated region
      $region57: #{lora_sam_forward.2} parent=11 // pred_check
        %p415 = pneg %p299
      $region58: #{lora_sam_forward.2} parent=11 // pred_check_branch
        %417 = sbr.rel (%p415) target = $region60
      $region59: #{lora_sam_forward.2} parent=11 // pred_region
        _
      $region60: #{lora_sam_forward.2} parent=11 // pred_fallthru
        _
      // Predicated region
      $region61: #{lora_sam_forward.2} parent=11 // pred_check
        %p418 = pneg %p320
      $region62: #{lora_sam_forward.2} parent=11 // pred_check_branch
        %420 = sbr.rel (%p418) target = $region64
      $region63: #{lora_sam_forward.2} parent=11 // pred_region
        _
      $region64: #{lora_sam_forward.2} parent=11 // pred_fallthru
        _
      // Predicated region
      $region65: #{lora_sam_forward.2} parent=11 // pred_check
        %p421 = pneg %p341
      $region66: #{lora_sam_forward.2} parent=11 // pred_check_branch
        %423 = sbr.rel (%p421) target = $region68
      $region67: #{lora_sam_forward.2} parent=11 // pred_region
        _
      $region68: #{lora_sam_forward.2} parent=11 // pred_fallthru
        _
    $region12: #{lora_sam_forward.2} parent=5 // pred_fallthru
      _
    %p424 = scmp.lt.s32.totalorder %s21, 2
    // Predicated region
    $region69: #{lora_sam_forward.2} parent=5 // pred_check
      %p425 = pneg %p424
    $region70: #{lora_sam_forward.2} parent=5 // pred_check_branch
      %427 = sbr.rel (%p425) target = $region72
    $region71: #{lora_sam_forward.2} parent=5 // pred_region
      // Predicated region
      $region73: #{lora_sam_forward.2} parent=71 // pred_check
        %p428 = pneg %p41
      $region74: #{lora_sam_forward.2} parent=71 // pred_check_branch
        %430 = sbr.rel (%p428) target = $region76
      $region75: #{lora_sam_forward.2} parent=71 // pred_region
        %s431 = smul.u32 2, %s21
        %p432 = scmp.lt.s32.totalorder %s431, 3
        %s433 = scalar_select %p432, %s431, 3
        %s434 = smul.addr %s433, 2
        %s435 = smul.addr %s434, 4
        %s436 = scalar_lea.vmem %s0, %s435
        %s437 = smul.u32 2, %s21
      $region76: #{lora_sam_forward.2} parent=71 // pred_fallthru
        _
    $region72: #{lora_sam_forward.2} parent=5 // pred_fallthru
      _
    %p438 = scmp.le.s32.totalorder 1, %s21
    %p439 = scmp.lt.s32.totalorder %s21, 3
    %p440 = pnand %p438, %p439
    %p441 = pneg %p440
    // Predicated region
    $region77: #{lora_sam_forward.2} parent=5 // pred_check
      _
    $region78: #{lora_sam_forward.2} parent=5 // pred_check_branch
      %443 = sbr.rel (%p440) target = $region80
    $region79: #{lora_sam_forward.2} parent=5 // pred_region
      %s444 = ssub.s32 %s21, 1
      %s445 = smul.u32 2, %s26
      %p446 = scmp.lt.s32.totalorder %s445, 3
      %s447 = scalar_select %p446, %s445, 3
      %s448 = smul.addr %s447, 2
      %s449 = smul.addr %s448, 4
      %s450 = scalar_lea.vmem %s0, %s449
      %p451 = pneg %p47
      %p452 = pneg %p44
      %p453 = pneg %p68
      %p454 = pneg %p65
      %p455 = pneg %p89
      %p456 = pneg %p86
      %p457 = pneg %p110
      %p458 = pneg %p107
      %p459 = pneg %p131
      %p460 = pneg %p128
      %p461 = pneg %p152
      %p462 = pneg %p149
      %p463 = pneg %p173
      %p464 = pneg %p170
      %p465 = pneg %p194
      %p466 = pneg %p191
      %p467 = pneg %p215
      %p468 = pneg %p212
      %p469 = pneg %p236
      %p470 = pneg %p233
      %p471 = pneg %p257
      %p472 = pneg %p254
      %p473 = pneg %p278
      %p474 = pneg %p275
      %p475 = pneg %p299
      %p476 = pneg %p296
      %p477 = pneg %p320
      %p478 = pneg %p317
      %p479 = pneg %p341
      %p480 = pneg %p338
      %p481 = pneg %p367
      %p482 = pneg %p364
      %s483 = smul.u32 2, %s26
      %p484 = scmp.lt.s32.totalorder %s483, 3
      %s485 = scalar_select %p484, %s483, 3
      %s486 = smul.addr %s485, 8
      %s487 = scalar_lea.vmem %s15, %s486
      %s488 = smul.u32 2, %s26
      %p489 = scmp.lt.s32.totalorder %s488, 3
      %s490 = scalar_select %p489, %s488, 3
      %s491 = smul.addr %s490, 2
      %s492 = smul.addr %s491, 4
      %s493 = scalar_lea.vmem %s0, %s492
      %s494 = smul.u32 2, %s26
      %s495 = smul.u32 2, %s26
      %p496 = scmp.lt.s32.totalorder %s495, 3
      %s497 = scalar_select %p496, %s495, 3
      %s498 = smul.addr %s497, 8
      %s499 = scalar_lea.vmem %s15, %s498
      %s500 = smul.u32 2, %s26
      %v502 = vld [vmem:[%s493] sm:$0xff]
      %v503 = vld [vmem:[%s493 + $0x8] sm:$0xff]
      %v504 = vld [vmem:[%s1] sm:$0xf]
      %v505 = vld [vmem:[%s1 + $0x4] sm:$0xf]
      %v506 = vld [vmem:[%s1 + $0x8] sm:$0xf]
      %v507 = vld [vmem:[%s1 + $0xc] sm:$0xf]
      %v508 = vld [vmem:[%s1 + $0x10] sm:$0xf]
      %v509 = vld [vmem:[%s1 + $0x14] sm:$0xf]
      %v510 = vld [vmem:[%s1 + $0x18] sm:$0xf]
      %v511 = vld [vmem:[%s1 + $0x1c] sm:$0xf]
      %v512 = vld [vmem:[%s1 + $0x20] sm:$0xf]
      %v513 = vld [vmem:[%s1 + $0x24] sm:$0xf]
      %v514 = vld [vmem:[%s1 + $0x28] sm:$0xf]
      %v515 = vld [vmem:[%s1 + $0x2c] sm:$0xf]
      %v516 = vld [vmem:[%s1 + $0x30] sm:$0xf]
      %v517 = vld [vmem:[%s1 + $0x34] sm:$0xf]
      %v518 = vld [vmem:[%s1 + $0x38] sm:$0xf]
      %v519 = vld [vmem:[%s1 + $0x3c] sm:$0xf]
      %v520 = vld [vmem:[%s1 + $0x40] sm:$0xf]
      %v521 = vld [vmem:[%s1 + $0x44] sm:$0xf]
      %v522 = vld [vmem:[%s1 + $0x48] sm:$0xf]
      %v523 = vld [vmem:[%s1 + $0x4c] sm:$0xf]
      %v524 = vld [vmem:[%s1 + $0x50] sm:$0xf]
      %v525 = vld [vmem:[%s1 + $0x54] sm:$0xf]
      %v526 = vld [vmem:[%s1 + $0x58] sm:$0xf]
      %v527 = vld [vmem:[%s1 + $0x5c] sm:$0xf]
      %v528 = vld [vmem:[%s2] sm:$0x1]
      %v530 = vlaneseq
      %v531 = vshrl.u32 %v530, 7
      %v532 = vsub.s32 0, %v531
      %v533 = vrot.slane %v528, %v532
      %v537 = vunpack.c.l.b16 %v502
      %v538 = vunpack.c.h.b16 %v502
      %v539 = vunpack.c.l.b16 %v503
      %v540 = vunpack.c.h.b16 %v503
      %v541 = vpack.c.b16 %v539, %v537
      %v542 = vpack.c.b16 %v540, %v538
      %v568 = vunpack.c.l.b16 %v504
      %v569 = vunpack.c.l.b16 %v505
      %v570 = vunpack.c.l.b16 %v506
      %v571 = vunpack.c.l.b16 %v507
      %v572 = vunpack.c.l.b16 %v508
      %v573 = vunpack.c.l.b16 %v509
      %v574 = vunpack.c.l.b16 %v510
      %v575 = vunpack.c.l.b16 %v511
      %v576 = vunpack.c.l.b16 %v512
      %v577 = vunpack.c.l.b16 %v513
      %v578 = vunpack.c.l.b16 %v514
      %v579 = vunpack.c.l.b16 %v515
      %v580 = vunpack.c.l.b16 %v516
      %v581 = vunpack.c.l.b16 %v517
      %v582 = vunpack.c.l.b16 %v518
      %v583 = vunpack.c.l.b16 %v519
      %v584 = vunpack.c.l.b16 %v520
      %v585 = vunpack.c.l.b16 %v521
      %v586 = vunpack.c.l.b16 %v522
      %v587 = vunpack.c.l.b16 %v523
      %v588 = vunpack.c.l.b16 %v524
      %v589 = vunpack.c.l.b16 %v525
      %v590 = vunpack.c.l.b16 %v526
      %v591 = vunpack.c.l.b16 %v527
      %v592 = vpack.c.b16 %v569, %v568
      %v593 = vpack.c.b16 %v571, %v570
      %v594 = vpack.c.b16 %v573, %v572
      %v595 = vpack.c.b16 %v575, %v574
      %v596 = vpack.c.b16 %v577, %v576
      %v597 = vpack.c.b16 %v579, %v578
      %v598 = vpack.c.b16 %v581, %v580
      %v599 = vpack.c.b16 %v583, %v582
      %v600 = vpack.c.b16 %v585, %v584
      %v601 = vpack.c.b16 %v587, %v586
      %v602 = vpack.c.b16 %v589, %v588
      %v603 = vpack.c.b16 %v591, %v590
      %vm616 = vcmask 523264
      %v618 = vsel %vm616, %v542, 0
      %620 = vmatprep.subr.bf16.mxu0 0
      %621 = vmatpush1.bf16.msra.mxu0 %v592
      %622 = vmatprep.subr.bf16.mxu0 0
      %623 = vmatpush1.bf16.msra.mxu0 %v593
      %624 = vmatprep.subr.bf16.mxu0 0
      %625 = vmatpush1.bf16.msra.mxu0 %v594
      %626 = vmatprep.subr.bf16.mxu0 0
      %627 = vmatpush1.bf16.msra.mxu0 %v595
      %628 = vmatprep.subr.bf16.mxu0 0
      %629 = vmatpush1.bf16.msra.mxu0 %v596
      %630 = vmatprep.subr.bf16.mxu0 0
      %631 = vmatpush1.bf16.msra.mxu0 %v597
      %632 = vmatprep.subr.bf16.mxu0 0
      %633 = vmatpush1.bf16.msra.mxu0 %v598
      %634 = vmatprep.subr.bf16.mxu0 0
      %635 = vmatpush1.bf16.msra.mxu0 %v599
      %636 = vmatprep.subr.bf16.mxu0 0
      %637 = vmatpush1.bf16.msra.mxu0 %v600
      %638 = vmatprep.subr.bf16.mxu0 0
      %639 = vmatpush1.bf16.msra.mxu0 %v601
      %640 = vmatprep.subr.bf16.mxu0 0
      %641 = vmatpush1.bf16.msra.mxu0 %v602
      %642 = vmatprep.subr.bf16.mxu0 0
      %643 = vmatpush1.bf16.msra.mxu0 %v603
      %644 = vmatprep.subr.bf16.mxu0 0
      %645 = vmatpush1.bf16.msra.mxu0 0
      %646 = vmatprep.subr.bf16.mxu0 0
      %647 = vmatpush1.bf16.msra.mxu0 0
      %648 = vmatprep.subr.bf16.mxu0 0
      %649 = vmatpush1.bf16.msra.mxu0 0
      %650 = vmatprep.subr.bf16.mxu0 0
      %651 = vmatpush1.bf16.msra.mxu0 0
      %652 = vmatprep.mubr.bf16.mxu0 %v618
      %653 = vmatmul.mubr.bf16.gmra.mrb[0].mxu0 %v541
      %v654 = vpop.f32.mrb[0].mxu0
      %v655 = vadd.f32 %v533, %v654
      %v656 = vpop.f32.mrb[0].mxu0
      %v657 = vpop.f32.mrb[0].mxu0
      %v658 = vadd.f32 %v533, %v657
      %v659 = vpop.f32.mrb[0].mxu0
      %660 = vdwg.mxu0
      %v661 = vld [vmem:[%s3] sm:$0x1]
      %v662 = vld [vmem:[%s4] sm:$0x1]
      %vm663 = vcmask 261120
      %v664 = vsel %vm663, %v655, 0.0
      %665 = vadd.xlane.f32.xlu0 %v664
      %v666 = vpop.xlane.xlu0 %665
      %v667 = vsel %vm663, %v658, 0.0
      %668 = vadd.xlane.f32.xlu0 %v667
      %v669 = vpop.xlane.xlu0 %668
      %v670 = vrcp.pop 32.0
      %v671 = vmul.f32 %v666, %v670
      %v672 = vmul.f32 %v669, %v670
      %v673 = vsub.f32 %v655, %v671
      %v674 = vsub.f32 %v658, %v672
      %v675 = vmul.f32 %v673, %v673
      %v676 = vmul.f32 %v674, %v674
      %v677 = vsel %vm663, %v675, 0.0
      %678 = vadd.xlane.f32.xlu0 %v677
      %v679 = vpop.xlane.xlu0 %678
      %v680 = vsel %vm663, %v676, 0.0
      %681 = vadd.xlane.f32.xlu0 %v680
      %v682 = vpop.xlane.xlu0 %681
      %v683 = vmul.f32 %v679, %v670
      %v684 = vmul.f32 %v682, %v670
      %v685 = vadd.f32 %v683, 1e-06
      %v686 = vadd.f32 %v684, 1e-06
      %v687 = vrsqrt.pop %v685
      %v688 = vrsqrt.pop %v686
      %v689 = vmul.f32 %v673, %v687
      %v690 = vmul.f32 %v674, %v688
      %v692 = vlaneseq
      %v693 = vshrl.u32 %v692, 7
      %v694 = vsub.s32 0, %v693
      %v695 = vrot.slane %v661, %v694
      %v697 = vmul.f32 %v689, %v695
      %v698 = vmul.f32 %v690, %v695
      %v700 = vlaneseq
      %v701 = vshrl.u32 %v700, 7
      %v702 = vsub.s32 0, %v701
      %v703 = vrot.slane %v662, %v702
      %v705 = vadd.f32 %v697, %v703
      %v706 = vadd.f32 %v698, %v703
      %v707 = vpack.c.bf16 %v706, %v705
      %v708 = vld [vmem:[%s5] sm:$0xf]
      %v709 = vld [vmem:[%s5 + $0x4] sm:$0xf]
      %v710 = vld [vmem:[%s5 + $0x8] sm:$0xf]
      %v711 = vld [vmem:[%s5 + $0xc] sm:$0xf]
      %v712 = vld [vmem:[%s6] sm:$0x1]
      %v714 = vlaneseq
      %v715 = vshrl.u32 %v714, 7
      %v716 = vsub.s32 0, %v715
      %v717 = vrot.slane %v712, %v716
      %v723 = vunpack.c.l.b16 %v708
      %v724 = vunpack.c.l.b16 %v709
      %v725 = vunpack.c.l.b16 %v710
      %v726 = vunpack.c.l.b16 %v711
      %v727 = vpack.c.b16 %v724, %v723
      %v728 = vpack.c.b16 %v726, %v725
      %v732 = vsel %vm663, %v707, 0
      %734 = vmatprep.subr.bf16.mxu0 0
      %735 = vmatpush1.bf16.msra.mxu0 %v727
      %736 = vmatprep.subr.bf16.mxu0 0
      %737 = vmatpush1.bf16.msra.mxu0 %v728
      %738 = vmatprep.subr.bf16.mxu0 0
      %739 = vmatpush1.bf16.msra.mxu0 0
      %740 = vmatprep.subr.bf16.mxu0 0
      %741 = vmatpush1.bf16.msra.mxu0 0
      %742 = vmatprep.subr.bf16.mxu0 0
      %743 = vmatpush1.bf16.msra.mxu0 0
      %744 = vmatprep.subr.bf16.mxu0 0
      %745 = vmatpush1.bf16.msra.mxu0 0
      %746 = vmatprep.subr.bf16.mxu0 0
      %747 = vmatpush1.bf16.msra.mxu0 0
      %748 = vmatprep.subr.bf16.mxu0 0
      %749 = vmatpush1.bf16.msra.mxu0 0
      %750 = vmatprep.subr.bf16.mxu0 0
      %751 = vmatpush1.bf16.msra.mxu0 0
      %752 = vmatprep.subr.bf16.mxu0 0
      %753 = vmatpush1.bf16.msra.mxu0 0
      %754 = vmatprep.subr.bf16.mxu0 0
      %755 = vmatpush1.bf16.msra.mxu0 0
      %756 = vmatprep.subr.bf16.mxu0 0
      %757 = vmatpush1.bf16.msra.mxu0 0
      %758 = vmatprep.subr.bf16.mxu0 0
      %759 = vmatpush1.bf16.msra.mxu0 0
      %760 = vmatprep.subr.bf16.mxu0 0
      %761 = vmatpush1.bf16.msra.mxu0 0
      %762 = vmatprep.subr.bf16.mxu0 0
      %763 = vmatpush1.bf16.msra.mxu0 0
      %764 = vmatprep.subr.bf16.mxu0 0
      %765 = vmatpush1.bf16.msra.mxu0 0
      %766 = vmatprep.mubr.bf16.mxu0 0
      %767 = vmatmul.mubr.bf16.gmra.mrb[0].mxu0 %v732
      %v768 = vpop.f32.mrb[0].mxu0
      %v769 = vadd.f32 %v717, %v768
      %v770 = vpop.f32.mrb[0].mxu0
      %v771 = vpop.f32.mrb[0].mxu0
      %v772 = vadd.f32 %v717, %v771
      %v773 = vpop.f32.mrb[0].mxu0
      %774 = vdwg.mxu0
      %v775 = vpack.c.bf16 %v772, %v769
      %777 = vrot.lane.b32.xlu0 %v775, 96
      %v778 = vpop.permute.xlu0 %777
      %vm779 = vcmask 64512
      %v781 = vsel %vm779, %v775, 0
      %v784 = vsel %vm779, %v778, 0
      %786 = vmatprep.subr.bf16.mxu0 0
      %787 = vmatpush1.bf16.xpose.msra.mxu0 %v784
      %788 = vmatprep.subr.bf16.mxu0 0
      %789 = vmatpush1.bf16.xpose.msra.mxu0 0
      %790 = vmatprep.subr.bf16.mxu0 0
      %791 = vmatpush1.bf16.xpose.msra.mxu0 0
      %792 = vmatprep.subr.bf16.mxu0 0
      %793 = vmatpush1.bf16.xpose.msra.mxu0 0
      %794 = vmatprep.subr.bf16.mxu0 0
      %795 = vmatpush1.bf16.xpose.msra.mxu0 0
      %796 = vmatprep.subr.bf16.mxu0 0
      %797 = vmatpush1.bf16.xpose.msra.mxu0 0
      %798 = vmatprep.subr.bf16.mxu0 0
      %799 = vmatpush1.bf16.xpose.msra.mxu0 0
      %800 = vmatprep.subr.bf16.mxu0 0
      %801 = vmatpush1.bf16.xpose.msra.mxu0 0
      %802 = vmatprep.subr.bf16.mxu0 0
      %803 = vmatpush1.bf16.xpose.msra.mxu0 0
      %804 = vmatprep.subr.bf16.mxu0 0
      %805 = vmatpush1.bf16.xpose.msra.mxu0 0
      %806 = vmatprep.subr.bf16.mxu0 0
      %807 = vmatpush1.bf16.xpose.msra.mxu0 0
      %808 = vmatprep.subr.bf16.mxu0 0
      %809 = vmatpush1.bf16.xpose.msra.mxu0 0
      %810 = vmatprep.subr.bf16.mxu0 0
      %811 = vmatpush1.bf16.xpose.msra.mxu0 0
      %812 = vmatprep.subr.bf16.mxu0 0
      %813 = vmatpush1.bf16.xpose.msra.mxu0 0
      %814 = vmatprep.subr.bf16.mxu0 0
      %815 = vmatpush1.bf16.xpose.msra.mxu0 0
      %816 = vmatprep.subr.bf16.mxu0 0
      %817 = vmatpush1.bf16.xpose.msra.mxu0 0
      %818 = vmatprep.mubr.bf16.mxu0 0
      %819 = vmatmul.mubr.bf16.gmra.mrb[0].mxu0 %v781
      %v820 = vpop.f32.mrb[0].mxu0
      %v821 = vadd.f32 0.0, %v820
      %v822 = vpop.f32.mrb[0].mxu0
      %v823 = vpop.f32.mrb[0].mxu0
      %v824 = vadd.f32 0.0, %v823
      %v825 = vpop.f32.mrb[0].mxu0
      %826 = vdwg.mxu0
      %v827 = vmul.f32 %v821, 0.35355338
      %v828 = vmul.f32 %v824, 0.35355338
      %vm829 = vcmask 130048
      %v830 = vsel %vm829, %v827, -inf
      %831 = vmax.xlane.f32.xlu0 %v830
      %v832 = vpop.xlane.xlu0 %831
      %v833 = vsel %vm829, %v828, -inf
      %834 = vmax.xlane.f32.xlu0 %v833
      %v835 = vpop.xlane.xlu0 %834
      %v836 = vsub.f32 %v827, %v832
      %v837 = vsub.f32 %v828, %v835
      %v838 = vmul.f32 %v836, 1.442695
      %v839 = vpow.pop %v838
      %v840 = vmul.f32 %v837, 1.442695
      %v841 = vpow.pop %v840
      %v842 = vsel %vm829, %v839, 0.0
      %843 = vadd.xlane.f32.xlu0 %v842
      %v844 = vpop.xlane.xlu0 %843
      %v845 = vsel %vm829, %v841, 0.0
      %846 = vadd.xlane.f32.xlu0 %v845
      %v847 = vpop.xlane.xlu0 %846
      %v848 = vrcp.pop %v844
      %v849 = vrcp.pop %v847
      %v850 = vmul.f32 %v839, %v848
      %v851 = vmul.f32 %v841, %v849
      %v852 = vpack.c.bf16 %v851, %v850
      %853 = vrot.lane.b32.xlu0 %v775, 64
      %v854 = vpop.permute.xlu0 %853
      %v857 = vsel %vm829, %v852, 0
      %859 = vmatprep.subr.bf16.mxu0 0
      %860 = vmatpush1.bf16.msra.mxu0 %v854
      %861 = vmatprep.subr.bf16.mxu0 0
      %862 = vmatpush1.bf16.msra.mxu0 0
      %863 = vmatprep.subr.bf16.mxu0 0
      %864 = vmatpush1.bf16.msra.mxu0 0
      %865 = vmatprep.subr.bf16.mxu0 0
      %866 = vmatpush1.bf16.msra.mxu0 0
      %867 = vmatprep.subr.bf16.mxu0 0
      %868 = vmatpush1.bf16.msra.mxu0 0
      %869 = vmatprep.subr.bf16.mxu0 0
      %870 = vmatpush1.bf16.msra.mxu0 0
      %871 = vmatprep.subr.bf16.mxu0 0
      %872 = vmatpush1.bf16.msra.mxu0 0
      %873 = vmatprep.subr.bf16.mxu0 0
      %874 = vmatpush1.bf16.msra.mxu0 0
      %875 = vmatprep.subr.bf16.mxu0 0
      %876 = vmatpush1.bf16.msra.mxu0 0
      %877 = vmatprep.subr.bf16.mxu0 0
      %878 = vmatpush1.bf16.msra.mxu0 0
      %879 = vmatprep.subr.bf16.mxu0 0
      %880 = vmatpush1.bf16.msra.mxu0 0
      %881 = vmatprep.subr.bf16.mxu0 0
      %882 = vmatpush1.bf16.msra.mxu0 0
      %883 = vmatprep.subr.bf16.mxu0 0
      %884 = vmatpush1.bf16.msra.mxu0 0
      %885 = vmatprep.subr.bf16.mxu0 0
      %886 = vmatpush1.bf16.msra.mxu0 0
      %887 = vmatprep.subr.bf16.mxu0 0
      %888 = vmatpush1.bf16.msra.mxu0 0
      %889 = vmatprep.subr.bf16.mxu0 0
      %890 = vmatpush1.bf16.msra.mxu0 0
      %891 = vmatprep.mubr.bf16.mxu0 0
      %892 = vmatmul.mubr.bf16.gmra.mrb[0].mxu0 %v857
      %v893 = vpop.f32.mrb[0].mxu0
      %v894 = vadd.f32 0.0, %v893
      %v895 = vpop.f32.mrb[0].mxu0
      %v896 = vpop.f32.mrb[0].mxu0
      %v897 = vadd.f32 0.0, %v896
      %v898 = vpop.f32.mrb[0].mxu0
      %899 = vdwg.mxu0
      %v900 = vpack.c.bf16 %v897, %v894
      %v901 = vld [vmem:[%s7] sm:$0xff]
      %v902 = vpack.c.bf16 %v901, %v901
      %903 = vrot.lane.b32.xlu0 %v775, 120
      %v904 = vpop.permute.xlu0 %903
      %905 = vrot.lane.b32.xlu0 %v775, 88
      %v906 = vpop.permute.xlu0 %905
      %v908 = vsel %vm779, %v904, 0
      %v911 = vsel %vm779, %v906, 0
      %913 = vmatprep.subr.bf16.mxu0 0
      %914 = vmatpush1.bf16.xpose.msra.mxu0 %v911
      %915 = vmatprep.subr.bf16.mxu0 0
      %916 = vmatpush1.bf16.xpose.msra.mxu0 0
      %917 = vmatprep.subr.bf16.mxu0 0
      %918 = vmatpush1.bf16.xpose.msra.mxu0 0
      %919 = vmatprep.subr.bf16.mxu0 0
      %920 = vmatpush1.bf16.xpose.msra.mxu0 0
      %921 = vmatprep.subr.bf16.mxu0 0
      %922 = vmatpush1.bf16.xpose.msra.mxu0 0
      %923 = vmatprep.subr.bf16.mxu0 0
      %924 = vmatpush1.bf16.xpose.msra.mxu0 0
      %925 = vmatprep.subr.bf16.mxu0 0
      %926 = vmatpush1.bf16.xpose.msra.mxu0 0
      %927 = vmatprep.subr.bf16.mxu0 0
      %928 = vmatpush1.bf16.xpose.msra.mxu0 0
      %929 = vmatprep.subr.bf16.mxu0 0
      %930 = vmatpush1.bf16.xpose.msra.mxu0 0
      %931 = vmatprep.subr.bf16.mxu0 0
      %932 = vmatpush1.bf16.xpose.msra.mxu0 0
      %933 = vmatprep.subr.bf16.mxu0 0
      %934 = vmatpush1.bf16.xpose.msra.mxu0 0
      %935 = vmatprep.subr.bf16.mxu0 0
      %936 = vmatpush1.bf16.xpose.msra.mxu0 0
      %937 = vmatprep.subr.bf16.mxu0 0
      %938 = vmatpush1.bf16.xpose.msra.mxu0 0
      %939 = vmatprep.subr.bf16.mxu0 0
      %940 = vmatpush1.bf16.xpose.msra.mxu0 0
      %941 = vmatprep.subr.bf16.mxu0 0
      %942 = vmatpush1.bf16.xpose.msra.mxu0 0
      %943 = vmatprep.subr.bf16.mxu0 0
      %944 = vmatpush1.bf16.xpose.msra.mxu0 0
      %945 = vmatprep.mubr.bf16.mxu0 0
      %946 = vmatmul.mubr.bf16.gmra.mrb[0].mxu0 %v908
      %v947 = vpop.f32.mrb[0].mxu0
      %v948 = vadd.f32 0.0, %v947
      %v949 = vpop.f32.mrb[0].mxu0
      %v950 = vpop.f32.mrb[0].mxu0
      %v951 = vadd.f32 0.0, %v950
      %v952 = vpop.f32.mrb[0].mxu0
      %953 = vdwg.mxu0
      %v954 = vmul.f32 %v948, 0.35355338
      %v955 = vmul.f32 %v951, 0.35355338
      %v956 = vsel %vm829, %v954, -inf
      %957 = vmax.xlane.f32.xlu0 %v956
      %v958 = vpop.xlane.xlu0 %957
      %v959 = vsel %vm829, %v955, -inf
      %960 = vmax.xlane.f32.xlu0 %v959
      %v961 = vpop.xlane.xlu0 %960
      %v962 = vsub.f32 %v954, %v958
      %v963 = vsub.f32 %v955, %v961
      %v964 = vmul.f32 %v962, 1.442695
      %v965 = vpow.pop %v964
      %v966 = vmul.f32 %v963, 1.442695
      %v967 = vpow.pop %v966
      %v968 = vsel %vm829, %v965, 0.0
      %969 = vadd.xlane.f32.xlu0 %v968
      %v970 = vpop.xlane.xlu0 %969
      %v971 = vsel %vm829, %v967, 0.0
      %972 = vadd.xlane.f32.xlu0 %v971
      %v973 = vpop.xlane.xlu0 %972
      %v974 = vrcp.pop %v970
      %v975 = vrcp.pop %v973
      %v976 = vmul.f32 %v965, %v974
      %v977 = vmul.f32 %v967, %v975
      %v978 = vpack.c.bf16 %v977, %v976
      %979 = vrot.lane.b32.xlu0 %v775, 56
      %v980 = vpop.permute.xlu0 %979
      %v983 = vsel %vm829, %v978, 0
      %985 = vmatprep.subr.bf16.mxu0 0
      %986 = vmatpush1.bf16.msra.mxu0 %v980
      %987 = vmatprep.subr.bf16.mxu0 0
      %988 = vmatpush1.bf16.msra.mxu0 0
      %989 = vmatprep.subr.bf16.mxu0 0
      %990 = vmatpush1.bf16.msra.mxu0 0
      %991 = vmatprep.subr.bf16.mxu0 0
      %992 = vmatpush1.bf16.msra.mxu0 0
      %993 = vmatprep.subr.bf16.mxu0 0
      %994 = vmatpush1.bf16.msra.mxu0 0
      %995 = vmatprep.subr.bf16.mxu0 0
      %996 = vmatpush1.bf16.msra.mxu0 0
      %997 = vmatprep.subr.bf16.mxu0 0
      %998 = vmatpush1.bf16.msra.mxu0 0
      %999 = vmatprep.subr.bf16.mxu0 0
      %1000 = vmatpush1.bf16.msra.mxu0 0
      %1001 = vmatprep.subr.bf16.mxu0 0
      %1002 = vmatpush1.bf16.msra.mxu0 0
      %1003 = vmatprep.subr.bf16.mxu0 0
      %1004 = vmatpush1.bf16.msra.mxu0 0
      %1005 = vmatprep.subr.bf16.mxu0 0
      %1006 = vmatpush1.bf16.msra.mxu0 0
      %1007 = vmatprep.subr.bf16.mxu0 0
      %1008 = vmatpush1.bf16.msra.mxu0 0
      %1009 = vmatprep.subr.bf16.mxu0 0
      %1010 = vmatpush1.bf16.msra.mxu0 0
      %1011 = vmatprep.subr.bf16.mxu0 0
      %1012 = vmatpush1.bf16.msra.mxu0 0
      %1013 = vmatprep.subr.bf16.mxu0 0
      %1014 = vmatpush1.bf16.msra.mxu0 0
      %1015 = vmatprep.subr.bf16.mxu0 0
      %1016 = vmatpush1.bf16.msra.mxu0 0
      %1017 = vmatprep.mubr.bf16.mxu0 0
      %1018 = vmatmul.mubr.bf16.gmra.mrb[0].mxu0 %v983
      %v1019 = vpop.f32.mrb[0].mxu0
      %v1020 = vadd.f32 0.0, %v1019
      %v1021 = vpop.f32.mrb[0].mxu0
      %v1022 = vpop.f32.mrb[0].mxu0
      %v1023 = vadd.f32 0.0, %v1022
      %v1024 = vpop.f32.mrb[0].mxu0
      %1025 = vdwg.mxu0
      %v1026 = vpack.c.bf16 %v1023, %v1020
      %v1027 = vld [vmem:[%s7 + $0x8] sm:$0xff]
      %v1028 = vpack.c.bf16 %v1027, %v1027
      %v1030 = vsel %vm779, %v1026, 0
      %vm1032 = vcmask 1043456
      %v1034 = vsel %vm1032, %v1028, 0
      %1036 = vmatprep.subr.bf16.mxu0 0
      %1037 = vmatpush1.bf16.msra.mxu0 %v1034
      %1038 = vmatprep.subr.bf16.mxu0 0
      %1039 = vmatpush1.bf16.msra.mxu0 0
      %1040 = vmatprep.subr.bf16.mxu0 0
      %1041 = vmatpush1.bf16.msra.mxu0 0
      %1042 = vmatprep.subr.bf16.mxu0 0
      %1043 = vmatpush1.bf16.msra.mxu0 0
      %1044 = vmatprep.subr.bf16.mxu0 0
      %1045 = vmatpush1.bf16.msra.mxu0 0
      %1046 = vmatprep.subr.bf16.mxu0 0
      %1047 = vmatpush1.bf16.msra.mxu0 0
      %1048 = vmatprep.subr.bf16.mxu0 0
      %1049 = vmatpush1.bf16.msra.mxu0 0
      %1050 = vmatprep.subr.bf16.mxu0 0
      %1051 = vmatpush1.bf16.msra.mxu0 0
      %1052 = vmatprep.subr.bf16.mxu0 0
      %1053 = vmatpush1.bf16.msra.mxu0 0
      %1054 = vmatprep.subr.bf16.mxu0 0
      %1055 = vmatpush1.bf16.msra.mxu0 0
      %1056 = vmatprep.subr.bf16.mxu0 0
      %1057 = vmatpush1.bf16.msra.mxu0 0
      %1058 = vmatprep.subr.bf16.mxu0 0
      %1059 = vmatpush1.bf16.msra.mxu0 0
      %1060 = vmatprep.subr.bf16.mxu0 0
      %1061 = vmatpush1.bf16.msra.mxu0 0
      %1062 = vmatprep.subr.bf16.mxu0 0
      %1063 = vmatpush1.bf16.msra.mxu0 0
      %1064 = vmatprep.subr.bf16.mxu0 0
      %1065 = vmatpush1.bf16.msra.mxu0 0
      %1066 = vmatprep.subr.bf16.mxu0 0
      %1067 = vmatpush1.bf16.msra.mxu0 0
      %1068 = vmatprep.mubr.bf16.mxu0 0
      %1069 = vmatmul.mubr.bf16.gmra.mrb[0].mxu0 %v1030
      %v1070 = vpop.f32.mrb[0].mxu0
      %v1071 = vadd.f32 0.0, %v1070
      %v1072 = vpop.f32.mrb[0].mxu0
      %v1073 = vpop.f32.mrb[0].mxu0
      %v1074 = vadd.f32 0.0, %v1073
      %v1075 = vpop.f32.mrb[0].mxu0
      %1076 = vdwg.mxu0
      %v1078 = vsel %vm779, %v900, 0
      %v1081 = vsel %vm1032, %v902, 0
      %1083 = vmatprep.subr.bf16.mxu0 0
      %1084 = vmatpush1.bf16.msra.mxu0 %v1081
      %1085 = vmatprep.subr.bf16.mxu0 0
      %1086 = vmatpush1.bf16.msra.mxu0 0
      %1087 = vmatprep.subr.bf16.mxu0 0
      %1088 = vmatpush1.bf16.msra.mxu0 0
      %1089 = vmatprep.subr.bf16.mxu0 0
      %1090 = vmatpush1.bf16.msra.mxu0 0
      %1091 = vmatprep.subr.bf16.mxu0 0
      %1092 = vmatpush1.bf16.msra.mxu0 0
      %1093 = vmatprep.subr.bf16.mxu0 0
      %1094 = vmatpush1.bf16.msra.mxu0 0
      %1095 = vmatprep.subr.bf16.mxu0 0
      %1096 = vmatpush1.bf16.msra.mxu0 0
      %1097 = vmatprep.subr.bf16.mxu0 0
      %1098 = vmatpush1.bf16.msra.mxu0 0
      %1099 = vmatprep.subr.bf16.mxu0 0
      %1100 = vmatpush1.bf16.msra.mxu0 0
      %1101 = vmatprep.subr.bf16.mxu0 0
      %1102 = vmatpush1.bf16.msra.mxu0 0
      %1103 = vmatprep.subr.bf16.mxu0 0
      %1104 = vmatpush1.bf16.msra.mxu0 0
      %1105 = vmatprep.subr.bf16.mxu0 0
      %1106 = vmatpush1.bf16.msra.mxu0 0
      %1107 = vmatprep.subr.bf16.mxu0 0
      %1108 = vmatpush1.bf16.msra.mxu0 0
      %1109 = vmatprep.subr.bf16.mxu0 0
      %1110 = vmatpush1.bf16.msra.mxu0 0
      %1111 = vmatprep.subr.bf16.mxu0 0
      %1112 = vmatpush1.bf16.msra.mxu0 0
      %1113 = vmatprep.subr.bf16.mxu0 0
      %1114 = vmatpush1.bf16.msra.mxu0 0
      %1115 = vmatprep.mubr.bf16.mxu0 0
      %1116 = vmatmul.mubr.bf16.gmra.mrb[0].mxu0 %v1078
      %v1117 = vpop.f32.mrb[0].mxu0
      %v1118 = vadd.f32 %v1071, %v1117
      %v1119 = vpop.f32.mrb[0].mxu0
      %v1120 = vpop.f32.mrb[0].mxu0
      %v1121 = vadd.f32 %v1074, %v1120
      %v1122 = vpop.f32.mrb[0].mxu0
      %1123 = vdwg.mxu0
      %1124 = vrot.lane.b32.xlu0 %v775, 112
      %v1125 = vpop.permute.xlu0 %1124
      %1126 = vrot.lane.b32.xlu0 %v775, 80
      %v1127 = vpop.permute.xlu0 %1126
      %v1129 = vsel %vm779, %v1125, 0
      %v1132 = vsel %vm779, %v1127, 0
      %1134 = vmatprep.subr.bf16.mxu0 0
      %1135 = vmatpush1.bf16.xpose.msra.mxu0 %v1132
      %1136 = vmatprep.subr.bf16.mxu0 0
      %1137 = vmatpush1.bf16.xpose.msra.mxu0 0
      %1138 = vmatprep.subr.bf16.mxu0 0
      %1139 = vmatpush1.bf16.xpose.msra.mxu0 0
      %1140 = vmatprep.subr.bf16.mxu0 0
      %1141 = vmatpush1.bf16.xpose.msra.mxu0 0
      %1142 = vmatprep.subr.bf16.mxu0 0
      %1143 = vmatpush1.bf16.xpose.msra.mxu0 0
      %1144 = vmatprep.subr.bf16.mxu0 0
      %1145 = vmatpush1.bf16.xpose.msra.mxu0 0
      %1146 = vmatprep.subr.bf16.mxu0 0
      %1147 = vmatpush1.bf16.xpose.msra.mxu0 0
      %1148 = vmatprep.subr.bf16.mxu0 0
      %1149 = vmatpush1.bf16.xpose.msra.mxu0 0
      %1150 = vmatprep.subr.bf16.mxu0 0
      %1151 = vmatpush1.bf16.xpose.msra.mxu0 0
      %1152 = vmatprep.subr.bf16.mxu0 0
      %1153 = vmatpush1.bf16.xpose.msra.mxu0 0
      %1154 = vmatprep.subr.bf16.mxu0 0
      %1155 = vmatpush1.bf16.xpose.msra.mxu0 0
      %1156 = vmatprep.subr.bf16.mxu0 0
      %1157 = vmatpush1.bf16.xpose.msra.mxu0 0
      %1158 = vmatprep.subr.bf16.mxu0 0
      %1159 = vmatpush1.bf16.xpose.msra.mxu0 0
      %1160 = vmatprep.subr.bf16.mxu0 0
      %1161 = vmatpush1.bf16.xpose.msra.mxu0 0
      %1162 = vmatprep.subr.bf16.mxu0 0
      %1163 = vmatpush1.bf16.xpose.msra.mxu0 0
      %1164 = vmatprep.subr.bf16.mxu0 0
      %1165 = vmatpush1.bf16.xpose.msra.mxu0 0
      %1166 = vmatprep.mubr.bf16.mxu0 0
      %1167 = vmatmul.mubr.bf16.gmra.mrb[0].mxu0 %v1129
      %v1168 = vpop.f32.mrb[0].mxu0
      %v1169 = vadd.f32 0.0, %v1168
      %v1170 = vpop.f32.mrb[0].mxu0
      %v1171 = vpop.f32.mrb[0].mxu0
      %v1172 = vadd.f32 0.0, %v1171
      %v1173 = vpop.f32.mrb[0].mxu0
      %1174 = vdwg.mxu0
      %v1175 = vmul.f32 %v1169, 0.35355338
      %v1176 = vmul.f32 %v1172, 0.35355338
      %v1177 = vsel %vm829, %v1175, -inf
      %1178 = vmax.xlane.f32.xlu0 %v1177
      %v1179 = vpop.xlane.xlu0 %1178
      %v1180 = vsel %vm829, %v1176, -inf
      %1181 = vmax.xlane.f32.xlu0 %v1180
      %v1182 = vpop.xlane.xlu0 %1181
      %v1183 = vsub.f32 %v1175, %v1179
      %v1184 = vsub.f32 %v1176, %v1182
      %v1185 = vmul.f32 %v1183, 1.442695
      %v1186 = vpow.pop %v1185
      %v1187 = vmul.f32 %v1184, 1.442695
      %v1188 = vpow.pop %v1187
      %v1189 = vsel %vm829, %v1186, 0.0
      %1190 = vadd.xlane.f32.xlu0 %v1189
      %v1191 = vpop.xlane.xlu0 %1190
      %v1192 = vsel %vm829, %v1188, 0.0
      %1193 = vadd.xlane.f32.xlu0 %v1192
      %v1194 = vpop.xlane.xlu0 %1193
      %v1195 = vrcp.pop %v1191
      %v1196 = vrcp.pop %v1194
      %v1197 = vmul.f32 %v1186, %v1195
      %v1198 = vmul.f32 %v1188, %v1196
      %v1199 = vpack.c.bf16 %v1198, %v1197
      %1200 = vrot.lane.b32.xlu0 %v775, 48
      %v1201 = vpop.permute.xlu0 %1200
      %v1204 = vsel %vm829, %v1199, 0
      %1206 = vmatprep.subr.bf16.mxu0 0
      %1207 = vmatpush1.bf16.msra.mxu0 %v1201
      %1208 = vmatprep.subr.bf16.mxu0 0
      %1209 = vmatpush1.bf16.msra.mxu0 0
      %1210 = vmatprep.subr.bf16.mxu0 0
      %1211 = vmatpush1.bf16.msra.mxu0 0
      %1212 = vmatprep.subr.bf16.mxu0 0
      %1213 = vmatpush1.bf16.msra.mxu0 0
      %1214 = vmatprep.subr.bf16.mxu0 0
      %1215 = vmatpush1.bf16.msra.mxu0 0
      %1216 = vmatprep.subr.bf16.mxu0 0
      %1217 = vmatpush1.bf16.msra.mxu0 0
      %1218 = vmatprep.subr.bf16.mxu0 0
      %1219 = vmatpush1.bf16.msra.mxu0 0
      %1220 = vmatprep.subr.bf16.mxu0 0
      %1221 = vmatpush1.bf16.msra.mxu0 0
      %1222 = vmatprep.subr.bf16.mxu0 0
      %1223 = vmatpush1.bf16.msra.mxu0 0
      %1224 = vmatprep.subr.bf16.mxu0 0
      %1225 = vmatpush1.bf16.msra.mxu0 0
      %1226 = vmatprep.subr.bf16.mxu0 0
      %1227 = vmatpush1.bf16.msra.mxu0 0
      %1228 = vmatprep.subr.bf16.mxu0 0
      %1229 = vmatpush1.bf16.msra.mxu0 0
      %1230 = vmatprep.subr.bf16.mxu0 0
      %1231 = vmatpush1.bf16.msra.mxu0 0
      %1232 = vmatprep.subr.bf16.mxu0 0
      %1233 = vmatpush1.bf16.msra.mxu0 0
      %1234 = vmatprep.subr.bf16.mxu0 0
      %1235 = vmatpush1.bf16.msra.mxu0 0
      %1236 = vmatprep.subr.bf16.mxu0 0
      %1237 = vmatpush1.bf16.msra.mxu0 0
      %1238 = vmatprep.mubr.bf16.mxu0 0
      %1239 = vmatmul.mubr.bf16.gmra.mrb[0].mxu0 %v1204
      %v1240 = vpop.f32.mrb[0].mxu0
      %v1241 = vadd.f32 0.0, %v1240
      %v1242 = vpop.f32.mrb[0].mxu0
      %v1243 = vpop.f32.mrb[0].mxu0
      %v1244 = vadd.f32 0.0, %v1243
      %v1245 = vpop.f32.mrb[0].mxu0
      %1246 = vdwg.mxu0
      %v1247 = vpack.c.bf16 %v1244, %v1241
      %v1248 = vld [vmem:[%s7 + $0x10] sm:$0xff]
      %v1249 = vpack.c.bf16 %v1248, %v1248
      %v1251 = vsel %vm779, %v1247, 0
      %v1254 = vsel %vm1032, %v1249, 0
      %1256 = vmatprep.subr.bf16.mxu0 0
      %1257 = vmatpush1.bf16.msra.mxu0 %v1254
      %1258 = vmatprep.subr.bf16.mxu0 0
      %1259 = vmatpush1.bf16.msra.mxu0 0
      %1260 = vmatprep.subr.bf16.mxu0 0
      %1261 = vmatpush1.bf16.msra.mxu0 0
      %1262 = vmatprep.subr.bf16.mxu0 0
      %1263 = vmatpush1.bf16.msra.mxu0 0
      %1264 = vmatprep.subr.bf16.mxu0 0
      %1265 = vmatpush1.bf16.msra.mxu0 0
      %1266 = vmatprep.subr.bf16.mxu0 0
      %1267 = vmatpush1.bf16.msra.mxu0 0
      %1268 = vmatprep.subr.bf16.mxu0 0
      %1269 = vmatpush1.bf16.msra.mxu0 0
      %1270 = vmatprep.subr.bf16.mxu0 0
      %1271 = vmatpush1.bf16.msra.mxu0 0
      %1272 = vmatprep.subr.bf16.mxu0 0
      %1273 = vmatpush1.bf16.msra.mxu0 0
      %1274 = vmatprep.subr.bf16.mxu0 0
      %1275 = vmatpush1.bf16.msra.mxu0 0
      %1276 = vmatprep.subr.bf16.mxu0 0
      %1277 = vmatpush1.bf16.msra.mxu0 0
      %1278 = vmatprep.subr.bf16.mxu0 0
      %1279 = vmatpush1.bf16.msra.mxu0 0
      %1280 = vmatprep.subr.bf16.mxu0 0
      %1281 = vmatpush1.bf16.msra.mxu0 0
      %1282 = vmatprep.subr.bf16.mxu0 0
      %1283 = vmatpush1.bf16.msra.mxu0 0
      %1284 = vmatprep.subr.bf16.mxu0 0
      %1285 = vmatpush1.bf16.msra.mxu0 0
      %1286 = vmatprep.subr.bf16.mxu0 0
      %1287 = vmatpush1.bf16.msra.mxu0 0
      %1288 = vmatprep.mubr.bf16.mxu0 0
      %1289 = vmatmul.mubr.bf16.gmra.mrb[0].mxu0 %v1251
      %v1290 = vpop.f32.mrb[0].mxu0
      %v1291 = vadd.f32 0.0, %v1290
      %v1292 = vpop.f32.mrb[0].mxu0
      %v1293 = vpop.f32.mrb[0].mxu0
      %v1294 = vadd.f32 0.0, %v1293
      %v1295 = vpop.f32.mrb[0].mxu0
      %1296 = vdwg.mxu0
      %v1297 = vadd.f32 %v1118, %v1291
      %v1298 = vadd.f32 %v1121, %v1294
      %1299 = vrot.lane.b32.xlu0 %v775, 104
      %v1300 = vpop.permute.xlu0 %1299
      %1301 = vrot.lane.b32.xlu0 %v775, 72
      %v1302 = vpop.permute.xlu0 %1301
      %v1304 = vsel %vm779, %v1300, 0
      %v1307 = vsel %vm779, %v1302, 0
      %1309 = vmatprep.subr.bf16.mxu0 0
      %1310 = vmatpush1.bf16.xpose.msra.mxu0 %v1307
      %1311 = vmatprep.subr.bf16.mxu0 0
      %1312 = vmatpush1.bf16.xpose.msra.mxu0 0
      %1313 = vmatprep.subr.bf16.mxu0 0
      %1314 = vmatpush1.bf16.xpose.msra.mxu0 0
      %1315 = vmatprep.subr.bf16.mxu0 0
      %1316 = vmatpush1.bf16.xpose.msra.mxu0 0
      %1317 = vmatprep.subr.bf16.mxu0 0
      %1318 = vmatpush1.bf16.xpose.msra.mxu0 0
      %1319 = vmatprep.subr.bf16.mxu0 0
      %1320 = vmatpush1.bf16.xpose.msra.mxu0 0
      %1321 = vmatprep.subr.bf16.mxu0 0
      %1322 = vmatpush1.bf16.xpose.msra.mxu0 0
      %1323 = vmatprep.subr.bf16.mxu0 0
      %1324 = vmatpush1.bf16.xpose.msra.mxu0 0
      %1325 = vmatprep.subr.bf16.mxu0 0
      %1326 = vmatpush1.bf16.xpose.msra.mxu0 0
      %1327 = vmatprep.subr.bf16.mxu0 0
      %1328 = vmatpush1.bf16.xpose.msra.mxu0 0
      %1329 = vmatprep.subr.bf16.mxu0 0
      %1330 = vmatpush1.bf16.xpose.msra.mxu0 0
      %1331 = vmatprep.subr.bf16.mxu0 0
      %1332 = vmatpush1.bf16.xpose.msra.mxu0 0
      %1333 = vmatprep.subr.bf16.mxu0 0
      %1334 = vmatpush1.bf16.xpose.msra.mxu0 0
      %1335 = vmatprep.subr.bf16.mxu0 0
      %1336 = vmatpush1.bf16.xpose.msra.mxu0 0
      %1337 = vmatprep.subr.bf16.mxu0 0
      %1338 = vmatpush1.bf16.xpose.msra.mxu0 0
      %1339 = vmatprep.subr.bf16.mxu0 0
      %1340 = vmatpush1.bf16.xpose.msra.mxu0 0
      %1341 = vmatprep.mubr.bf16.mxu0 0
      %1342 = vmatmul.mubr.bf16.gmra.mrb[0].mxu0 %v1304
      %v1343 = vpop.f32.mrb[0].mxu0
      %v1344 = vadd.f32 0.0, %v1343
      %v1345 = vpop.f32.mrb[0].mxu0
      %v1346 = vpop.f32.mrb[0].mxu0
      %v1347 = vadd.f32 0.0, %v1346
      %v1348 = vpop.f32.mrb[0].mxu0
      %1349 = vdwg.mxu0
      %v1350 = vmul.f32 %v1344, 0.35355338
      %v1351 = vmul.f32 %v1347, 0.35355338
      %v1352 = vsel %vm829, %v1350, -inf
      %1353 = vmax.xlane.f32.xlu0 %v1352
      %v1354 = vpop.xlane.xlu0 %1353
      %v1355 = vsel %vm829, %v1351, -inf
      %1356 = vmax.xlane.f32.xlu0 %v1355
      %v1357 = vpop.xlane.xlu0 %1356
      %v1358 = vsub.f32 %v1350, %v1354
      %v1359 = vsub.f32 %v1351, %v1357
      %v1360 = vmul.f32 %v1358, 1.442695
      %v1361 = vpow.pop %v1360
      %v1362 = vmul.f32 %v1359, 1.442695
      %v1363 = vpow.pop %v1362
      %v1364 = vsel %vm829, %v1361, 0.0
      %1365 = vadd.xlane.f32.xlu0 %v1364
      %v1366 = vpop.xlane.xlu0 %1365
      %v1367 = vsel %vm829, %v1363, 0.0
      %1368 = vadd.xlane.f32.xlu0 %v1367
      %v1369 = vpop.xlane.xlu0 %1368
      %v1370 = vrcp.pop %v1366
      %v1371 = vrcp.pop %v1369
      %v1372 = vmul.f32 %v1361, %v1370
      %v1373 = vmul.f32 %v1363, %v1371
      %v1374 = vpack.c.bf16 %v1373, %v1372
      %1375 = vrot.lane.b32.xlu0 %v775, 40
      %v1376 = vpop.permute.xlu0 %1375
      %v1379 = vsel %vm829, %v1374, 0
      %1381 = vmatprep.subr.bf16.mxu0 0
      %1382 = vmatpush1.bf16.msra.mxu0 %v1376
      %1383 = vmatprep.subr.bf16.mxu0 0
      %1384 = vmatpush1.bf16.msra.mxu0 0
      %1385 = vmatprep.subr.bf16.mxu0 0
      %1386 = vmatpush1.bf16.msra.mxu0 0
      %1387 = vmatprep.subr.bf16.mxu0 0
      %1388 = vmatpush1.bf16.msra.mxu0 0
      %1389 = vmatprep.subr.bf16.mxu0 0
      %1390 = vmatpush1.bf16.msra.mxu0 0
      %1391 = vmatprep.subr.bf16.mxu0 0
      %1392 = vmatpush1.bf16.msra.mxu0 0
      %1393 = vmatprep.subr.bf16.mxu0 0
      %1394 = vmatpush1.bf16.msra.mxu0 0
      %1395 = vmatprep.subr.bf16.mxu0 0
      %1396 = vmatpush1.bf16.msra.mxu0 0
      %1397 = vmatprep.subr.bf16.mxu0 0
      %1398 = vmatpush1.bf16.msra.mxu0 0
      %1399 = vmatprep.subr.bf16.mxu0 0
      %1400 = vmatpush1.bf16.msra.mxu0 0
      %1401 = vmatprep.subr.bf16.mxu0 0
      %1402 = vmatpush1.bf16.msra.mxu0 0
      %1403 = vmatprep.subr.bf16.mxu0 0
      %1404 = vmatpush1.bf16.msra.mxu0 0
      %1405 = vmatprep.subr.bf16.mxu0 0
      %1406 = vmatpush1.bf16.msra.mxu0 0
      %1407 = vmatprep.subr.bf16.mxu0 0
      %1408 = vmatpush1.bf16.msra.mxu0 0
      %1409 = vmatprep.subr.bf16.mxu0 0
      %1410 = vmatpush1.bf16.msra.mxu0 0
      %1411 = vmatprep.subr.bf16.mxu0 0
      %1412 = vmatpush1.bf16.msra.mxu0 0
      %1413 = vmatprep.mubr.bf16.mxu0 0
      %1414 = vmatmul.mubr.bf16.gmra.mrb[0].mxu0 %v1379
      %v1415 = vpop.f32.mrb[0].mxu0
      %v1416 = vadd.f32 0.0, %v1415
      %v1417 = vpop.f32.mrb[0].mxu0
      %v1418 = vpop.f32.mrb[0].mxu0
      %v1419 = vadd.f32 0.0, %v1418
      %v1420 = vpop.f32.mrb[0].mxu0
      %1421 = vdwg.mxu0
      %v1422 = vpack.c.bf16 %v1419, %v1416
      %v1423 = vld [vmem:[%s7 + $0x18] sm:$0xff]
      %v1424 = vpack.c.bf16 %v1423, %v1423
      %v1426 = vsel %vm779, %v1422, 0
      %v1429 = vsel %vm1032, %v1424, 0
      %1431 = vmatprep.subr.bf16.mxu0 0
      %1432 = vmatpush1.bf16.msra.mxu0 %v1429
      %1433 = vmatprep.subr.bf16.mxu0 0
      %1434 = vmatpush1.bf16.msra.mxu0 0
      %1435 = vmatprep.subr.bf16.mxu0 0
      %1436 = vmatpush1.bf16.msra.mxu0 0
      %1437 = vmatprep.subr.bf16.mxu0 0
      %1438 = vmatpush1.bf16.msra.mxu0 0
      %1439 = vmatprep.subr.bf16.mxu0 0
      %1440 = vmatpush1.bf16.msra.mxu0 0
      %1441 = vmatprep.subr.bf16.mxu0 0
      %1442 = vmatpush1.bf16.msra.mxu0 0
      %1443 = vmatprep.subr.bf16.mxu0 0
      %1444 = vmatpush1.bf16.msra.mxu0 0
      %1445 = vmatprep.subr.bf16.mxu0 0
      %1446 = vmatpush1.bf16.msra.mxu0 0
      %1447 = vmatprep.subr.bf16.mxu0 0
      %1448 = vmatpush1.bf16.msra.mxu0 0
      %1449 = vmatprep.subr.bf16.mxu0 0
      %1450 = vmatpush1.bf16.msra.mxu0 0
      %1451 = vmatprep.subr.bf16.mxu0 0
      %1452 = vmatpush1.bf16.msra.mxu0 0
      %1453 = vmatprep.subr.bf16.mxu0 0
      %1454 = vmatpush1.bf16.msra.mxu0 0
      %1455 = vmatprep.subr.bf16.mxu0 0
      %1456 = vmatpush1.bf16.msra.mxu0 0
      %1457 = vmatprep.subr.bf16.mxu0 0
      %1458 = vmatpush1.bf16.msra.mxu0 0
      %1459 = vmatprep.subr.bf16.mxu0 0
      %1460 = vmatpush1.bf16.msra.mxu0 0
      %1461 = vmatprep.subr.bf16.mxu0 0
      %1462 = vmatpush1.bf16.msra.mxu0 0
      %1463 = vmatprep.mubr.bf16.mxu0 0
      %1464 = vmatmul.mubr.bf16.gmra.mrb[0].mxu0 %v1426
      %v1465 = vpop.f32.mrb[0].mxu0
      %v1466 = vadd.f32 0.0, %v1465
      %v1467 = vpop.f32.mrb[0].mxu0
      %v1468 = vpop.f32.mrb[0].mxu0
      %v1469 = vadd.f32 0.0, %v1468
      %v1470 = vpop.f32.mrb[0].mxu0
      %1471 = vdwg.mxu0
      %v1472 = vadd.f32 %v1297, %v1466
      %v1473 = vadd.f32 %v1298, %v1469
      %v1474 = vadd.f32 %v655, %v1472
      %v1475 = vadd.f32 %v658, %v1473
      %v1476 = vld [vmem:[%s8] sm:$0x1]
      %v1478 = vlaneseq
      %v1479 = vshrl.u32 %v1478, 7
      %v1480 = vsub.s32 0, %v1479
      %v1481 = vrot.slane %v1476, %v1480
      %v1483 = vadd.f32 %v1474, %v1481
      %v1484 = vadd.f32 %v1475, %v1481
      %v1485 = vld [vmem:[%s9] sm:$0x1]
      %v1486 = vld [vmem:[%s10] sm:$0x1]
      %v1487 = vsel %vm663, %v1483, 0.0
      %1488 = vadd.xlane.f32.xlu0 %v1487
      %v1489 = vpop.xlane.xlu0 %1488
      %v1490 = vsel %vm663, %v1484, 0.0
      %1491 = vadd.xlane.f32.xlu0 %v1490
      %v1492 = vpop.xlane.xlu0 %1491
      %v1493 = vmul.f32 %v1489, %v670
      %v1494 = vmul.f32 %v1492, %v670
      %v1495 = vsub.f32 %v1483, %v1493
      %v1496 = vsub.f32 %v1484, %v1494
      %v1497 = vmul.f32 %v1495, %v1495
      %v1498 = vmul.f32 %v1496, %v1496
      %v1499 = vsel %vm663, %v1497, 0.0
      %1500 = vadd.xlane.f32.xlu0 %v1499
      %v1501 = vpop.xlane.xlu0 %1500
      %v1502 = vsel %vm663, %v1498, 0.0
      %1503 = vadd.xlane.f32.xlu0 %v1502
      %v1504 = vpop.xlane.xlu0 %1503
      %v1505 = vmul.f32 %v1501, %v670
      %v1506 = vmul.f32 %v1504, %v670
      %v1507 = vadd.f32 %v1505, 1e-06
      %v1508 = vadd.f32 %v1506, 1e-06
      %v1509 = vrsqrt.pop %v1507
      %v1510 = vrsqrt.pop %v1508
      %v1511 = vmul.f32 %v1495, %v1509
      %v1512 = vmul.f32 %v1496, %v1510
      %v1514 = vlaneseq
      %v1515 = vshrl.u32 %v1514, 7
      %v1516 = vsub.s32 0, %v1515
      %v1517 = vrot.slane %v1485, %v1516
      %v1519 = vmul.f32 %v1511, %v1517
      %v1520 = vmul.f32 %v1512, %v1517
      %v1522 = vlaneseq
      %v1523 = vshrl.u32 %v1522, 7
      %v1524 = vsub.s32 0, %v1523
      %v1525 = vrot.slane %v1486, %v1524
      %v1527 = vadd.f32 %v1519, %v1525
      %v1528 = vadd.f32 %v1520, %v1525
      %v1529 = vpack.c.bf16 %v1528, %v1527
      %v1530 = vld [vmem:[%s11] sm:$0xf]
      %v1531 = vld [vmem:[%s11 + $0x4] sm:$0xf]
      %v1532 = vld [vmem:[%s11 + $0x8] sm:$0xf]
      %v1533 = vld [vmem:[%s11 + $0xc] sm:$0xf]
      %v1534 = vld [vmem:[%s12] sm:$0x1]
      %v1536 = vlaneseq
      %v1537 = vshrl.u32 %v1536, 7
      %v1538 = vsub.s32 0, %v1537
      %v1539 = vrot.slane %v1534, %v1538
      %v1545 = vunpack.c.l.b16 %v1530
      %v1546 = vunpack.c.l.b16 %v1531
      %v1547 = vunpack.c.l.b16 %v1532
      %v1548 = vunpack.c.l.b16 %v1533
      %v1549 = vpack.c.b16 %v1546, %v1545
      %v1550 = vpack.c.b16 %v1548, %v1547
      %v1554 = vsel %vm663, %v1529, 0
      %1556 = vmatprep.subr.bf16.mxu0 0
      %1557 = vmatpush1.bf16.msra.mxu0 %v1549
      %1558 = vmatprep.subr.bf16.mxu0 0
      %1559 = vmatpush1.bf16.msra.mxu0 %v1550
      %1560 = vmatprep.subr.bf16.mxu0 0
      %1561 = vmatpush1.bf16.msra.mxu0 0
      %1562 = vmatprep.subr.bf16.mxu0 0
      %1563 = vmatpush1.bf16.msra.mxu0 0
      %1564 = vmatprep.subr.bf16.mxu0 0
      %1565 = vmatpush1.bf16.msra.mxu0 0
      %1566 = vmatprep.subr.bf16.mxu0 0
      %1567 = vmatpush1.bf16.msra.mxu0 0
      %1568 = vmatprep.subr.bf16.mxu0 0
      %1569 = vmatpush1.bf16.msra.mxu0 0
      %1570 = vmatprep.subr.bf16.mxu0 0
      %1571 = vmatpush1.bf16.msra.mxu0 0
      %1572 = vmatprep.subr.bf16.mxu0 0
      %1573 = vmatpush1.bf16.msra.mxu0 0
      %1574 = vmatprep.subr.bf16.mxu0 0
      %1575 = vmatpush1.bf16.msra.mxu0 0
      %1576 = vmatprep.subr.bf16.mxu0 0
      %1577 = vmatpush1.bf16.msra.mxu0 0
      %1578 = vmatprep.subr.bf16.mxu0 0
      %1579 = vmatpush1.bf16.msra.mxu0 0
      %1580 = vmatprep.subr.bf16.mxu0 0
      %1581 = vmatpush1.bf16.msra.mxu0 0
      %1582 = vmatprep.subr.bf16.mxu0 0
      %1583 = vmatpush1.bf16.msra.mxu0 0
      %1584 = vmatprep.subr.bf16.mxu0 0
      %1585 = vmatpush1.bf16.msra.mxu0 0
      %1586 = vmatprep.subr.bf16.mxu0 0
      %1587 = vmatpush1.bf16.msra.mxu0 0
      %1588 = vmatprep.mubr.bf16.mxu0 0
      %1589 = vmatmul.mubr.bf16.gmra.mrb[0].mxu0 %v1554
      %v1590 = vpop.f32.mrb[0].mxu0
      %v1591 = vadd.f32 %v1539, %v1590
      %v1592 = vpop.f32.mrb[0].mxu0
      %v1593 = vpop.f32.mrb[0].mxu0
      %v1594 = vadd.f32 %v1539, %v1593
      %v1595 = vpop.f32.mrb[0].mxu0
      %1596 = vdwg.mxu0
      %v1597 = vmul.f32 %v1591, %v1591
      %v1598 = vmul.f32 %v1594, %v1594
      %v1599 = vmul.f32 %v1591, %v1597
      %v1600 = vmul.f32 %v1594, %v1598
      %v1601 = vmul.f32 %v1599, 0.044715
      %v1602 = vmul.f32 %v1600, 0.044715
      %v1603 = vadd.f32 %v1591, %v1601
      %v1604 = vadd.f32 %v1594, %v1602
      %v1605 = vmul.f32 %v1603, 0.7978846
      %v1606 = vmul.f32 %v1604, 0.7978846
      %v1607 = vtanh.pop %v1605
      %v1608 = vtanh.pop %v1606
      %v1609 = vadd.f32 %v1607, 1.0
      %v1610 = vadd.f32 %v1608, 1.0
      %v1611 = vmul.f32 %v1609, 0.5
      %v1612 = vmul.f32 %v1610, 0.5
      %v1613 = vmul.f32 %v1591, %v1611
      %v1614 = vmul.f32 %v1594, %v1612
      %v1615 = vpack.c.bf16 %v1614, %v1613
      %v1616 = vld [vmem:[%s13] sm:$0xf]
      %v1617 = vld [vmem:[%s13 + $0x4] sm:$0xf]
      %v1618 = vld [vmem:[%s13 + $0x8] sm:$0xf]
      %v1619 = vld [vmem:[%s13 + $0xc] sm:$0xf]
      %v1620 = vld [vmem:[%s13 + $0x10] sm:$0xf]
      %v1621 = vld [vmem:[%s13 + $0x14] sm:$0xf]
      %v1622 = vld [vmem:[%s13 + $0x18] sm:$0xf]
      %v1623 = vld [vmem:[%s13 + $0x1c] sm:$0xf]
      %v1632 = vunpack.c.l.b16 %v1616
      %v1633 = vunpack.c.l.b16 %v1617
      %v1634 = vunpack.c.l.b16 %v1618
      %v1635 = vunpack.c.l.b16 %v1619
      %v1636 = vunpack.c.l.b16 %v1620
      %v1637 = vunpack.c.l.b16 %v1621
      %v1638 = vunpack.c.l.b16 %v1622
      %v1639 = vunpack.c.l.b16 %v1623
      %v1640 = vpack.c.b16 %v1633, %v1632
      %v1641 = vpack.c.b16 %v1635, %v1634
      %v1642 = vpack.c.b16 %v1637, %v1636
      %v1643 = vpack.c.b16 %v1639, %v1638
      %v1649 = vsel %vm616, %v1615, 0
      %1651 = vmatprep.subr.bf16.mxu0 0
      %1652 = vmatpush1.bf16.msra.mxu0 %v1640
      %1653 = vmatprep.subr.bf16.mxu0 0
      %1654 = vmatpush1.bf16.msra.mxu0 %v1641
      %1655 = vmatprep.subr.bf16.mxu0 0
      %1656 = vmatpush1.bf16.msra.mxu0 %v1642
      %1657 = vmatprep.subr.bf16.mxu0 0
      %1658 = vmatpush1.bf16.msra.mxu0 %v1643
      %1659 = vmatprep.subr.bf16.mxu0 0
      %1660 = vmatpush1.bf16.msra.mxu0 0
      %1661 = vmatprep.subr.bf16.mxu0 0
      %1662 = vmatpush1.bf16.msra.mxu0 0
      %1663 = vmatprep.subr.bf16.mxu0 0
      %1664 = vmatpush1.bf16.msra.mxu0 0
      %1665 = vmatprep.subr.bf16.mxu0 0
      %1666 = vmatpush1.bf16.msra.mxu0 0
      %1667 = vmatprep.subr.bf16.mxu0 0
      %1668 = vmatpush1.bf16.msra.mxu0 0
      %1669 = vmatprep.subr.bf16.mxu0 0
      %1670 = vmatpush1.bf16.msra.mxu0 0
      %1671 = vmatprep.subr.bf16.mxu0 0
      %1672 = vmatpush1.bf16.msra.mxu0 0
      %1673 = vmatprep.subr.bf16.mxu0 0
      %1674 = vmatpush1.bf16.msra.mxu0 0
      %1675 = vmatprep.subr.bf16.mxu0 0
      %1676 = vmatpush1.bf16.msra.mxu0 0
      %1677 = vmatprep.subr.bf16.mxu0 0
      %1678 = vmatpush1.bf16.msra.mxu0 0
      %1679 = vmatprep.subr.bf16.mxu0 0
      %1680 = vmatpush1.bf16.msra.mxu0 0
      %1681 = vmatprep.subr.bf16.mxu0 0
      %1682 = vmatpush1.bf16.msra.mxu0 0
      %1683 = vmatprep.mubr.bf16.mxu0 0
      %1684 = vmatmul.mubr.bf16.gmra.mrb[0].mxu0 %v1649
      %v1685 = vpop.f32.mrb[0].mxu0
      %v1686 = vadd.f32 0.0, %v1685
      %v1687 = vpop.f32.mrb[0].mxu0
      %v1688 = vpop.f32.mrb[0].mxu0
      %v1689 = vadd.f32 0.0, %v1688
      %v1690 = vpop.f32.mrb[0].mxu0
      %1691 = vdwg.mxu0
      %v1692 = vadd.f32 %v1483, %v1686
      %v1693 = vadd.f32 %v1484, %v1689
      %v1694 = vld [vmem:[%s14] sm:$0x1]
      %v1696 = vlaneseq
      %v1697 = vshrl.u32 %v1696, 7
      %v1698 = vsub.s32 0, %v1697
      %v1699 = vrot.slane %v1694, %v1698
      %v1701 = vadd.f32 %v1692, %v1699
      %v1702 = vadd.f32 %v1693, %v1699
      %1703 = vst.msk [vmem:[%s499] sm:$0xff] %vm663, %v1701
      %1704 = vst.msk [vmem:[%s499 + $0x8] sm:$0xff] %vm663, %v1702
      %s1705 = smul.u32 2, %s26
      %p1706 = scmp.lt.s32.totalorder %s1705, 3
      %s1707 = scalar_select %p1706, %s1705, 3
      %s1708 = smul.addr %s1707, 8
      %s1709 = scalar_lea.vmem %s15, %s1708
      // Predicated region
      $region81: #{lora_sam_forward.2} parent=79 // pred_check
        %p1710 = pneg %p364
      $region82: #{lora_sam_forward.2} parent=79 // pred_check_branch
        %1712 = sbr.rel (%p1710) target = $region84
      $region83: #{lora_sam_forward.2} parent=79 // pred_region
        %s1713 = smul.u32 2, %s26
      $region84: #{lora_sam_forward.2} parent=79 // pred_fallthru
        _
    $region80: #{lora_sam_forward.2} parent=5 // pred_fallthru
      _
    %p1714 = scmp.le.s32.totalorder 2, %s21
    // Predicated region
    $region85: #{lora_sam_forward.2} parent=5 // pred_check
      %p1715 = pneg %p1714
    $region86: #{lora_sam_forward.2} parent=5 // pred_check_branch
      %1717 = sbr.rel (%p1715) target = $region88
    $region87: #{lora_sam_forward.2} parent=5 // pred_region
      %s1718 = ssub.s32 %s21, 2
      // Predicated region
      $region89: #{lora_sam_forward.2} parent=87 // pred_check
        %p1719 = pneg %p370
      $region90: #{lora_sam_forward.2} parent=87 // pred_check_branch
        %1721 = sbr.rel (%p1719) target = $region92
      $region91: #{lora_sam_forward.2} parent=87 // pred_region
        %s1722 = smul.u32 2, %s27
        %p1723 = scmp.lt.s32.totalorder %s1722, 3
        %s1724 = scalar_select %p1723, %s1722, 3
        %s1725 = smul.addr %s1724, 8
        %s1726 = scalar_lea.vmem %s15, %s1725
      $region92: #{lora_sam_forward.2} parent=87 // pred_fallthru
        _
    $region88: #{lora_sam_forward.2} parent=5 // pred_fallthru
      _
  $region6: #{lora_sam_forward.2} parent=0 // loop_footer
    %s25 = sadd.s32 1, %s21
  $region7: #{lora_sam_forward.2} parent=0 // loop_footer_branch
    %20 = sbr.rel target = $region3
  $region8: #{lora_sam_forward.2} parent=0 // loop_exit
    _

</llo_original>
